<compile_context>
chip_gen: v7x
topology: tpu7x:2x2x1
jax: 0.10.0
libtpu: 0.0.40
codegen_flags: <defaults>
</compile_context>

<pallas_src>
import functools

import jax
import jax.numpy as jnp
from jax.experimental import pallas as pl
from jax.experimental.pallas import tpu as pltpu


# ------------------------------ kernel helpers -------------------------------

def _depthwise3x3(v, dw, masks, *, W, L):
    """Depthwise 3x3 conv, padding=1, stride=1, on a flattened (C, L) slab.

    v     : (C, L) f32 activations, L = images_per_step * H * W (row-major
            over (image, h, w)).
    dw    : (C, 9) per-channel tap weights, tap index k = 3*kh + kw (value).
    masks : (9, L) f32 {0,1} border-validity masks for each tap (value).
    """
    # Centre tap (kh = kw = 1): no shift, never masked.
    prods = [v * dw[:, 4:5]]
    for k in (0, 1, 2, 3, 5, 6, 7, 8):
        dh, dww = k // 3 - 1, k % 3 - 1
        d = dh * W + dww                            # flat read offset for this tap
        rolled = pltpu.roll(v, (-d) % L, axis=1)    # XLU lane rotation (free-ish)
        prods.append((rolled * masks[k:k + 1, :]) * dw[:, k:k + 1])
    # Pairwise (tree) sum: shorter dependent VALU chain than a serial acc.
    while len(prods) > 1:
        nxt = [prods[i] + prods[i + 1] for i in range(0, len(prods) - 1, 2)]
        if len(prods) % 2:
            nxt.append(prods[-1])
        prods = nxt
    return prods[0]


# ---------------------------------- kernel ------------------------------------

def xception_block_kernel(x_ref, mask_ref,
                          dw1_ref, dw23_ref,
                          pw_in_ref, pw_out_ref, bias_ref,
                          o_ref,
                          *, W, L, start_with_relu, downsample):
    x = x_ref[...]                                   # (Cin, L) f32
    residual = x                                     # residual taken pre-ReLU

    masks = mask_ref[...]                            # (9, L)  load once
    dw23 = dw23_ref[...]                             # (2, Cout, 9)
    pw_in = pw_in_ref[...]                           # (1|2, Cout, Cin), BN scale folded
    pw_out = pw_out_ref[...]                         # (2, Cout, Cout),  BN scale folded
    bias = bias_ref[...]                             # (Cout, 4) = [b1,b2,b3,bsc]
    mdt = pw_in_ref.dtype                            # matmul input dtype (f32 or bf16)

    if start_with_relu:
        x = jnp.maximum(x, 0.0)

    # SeparableConv 1 + BN1 + ReLU
    x = _depthwise3x3(x, dw1_ref[...], masks, W=W, L=L)
    x = jnp.dot(pw_in[0], x.astype(mdt), preferred_element_type=jnp.float32)   # MXU
    x = jnp.maximum(x + bias[:, 0:1], 0.0)

    # SeparableConv 2 + BN2 + ReLU
    x = _depthwise3x3(x, dw23[0], masks, W=W, L=L)
    x = jnp.dot(pw_out[0], x.astype(mdt), preferred_element_type=jnp.float32)  # MXU
    x = jnp.maximum(x + bias[:, 1:2], 0.0)

    # SeparableConv 3 + BN3 (stride = 1)
    x = _depthwise3x3(x, dw23[1], masks, W=W, L=L)
    x = jnp.dot(pw_out[1], x.astype(mdt), preferred_element_type=jnp.float32)  # MXU
    x = x + bias[:, 2:3]

    if downsample:
        residual = jnp.dot(pw_in[1], residual.astype(mdt),
                           preferred_element_type=jnp.float32)                 # MXU
        residual = residual + bias[:, 3:4]

    # Lane-dense store: (Cout, L) with L a multiple of 128.
    o_ref[...] = (x + residual).astype(o_ref.dtype)


# ---------------------------------- wrapper ------------------------------------

def _border_masks(H, W):
    """(9, H*W) f32 validity masks for the 3x3 taps (tap k = 3*kh + kw)."""
    hh, ww = jnp.meshgrid(jnp.arange(H), jnp.arange(W), indexing="ij")
    rows = []
    for kh in range(3):
        for kw in range(3):
            dh, dw = kh - 1, kw - 1
            valid = ((hh + dh >= 0) & (hh + dh < H) &
                     (ww + dw >= 0) & (ww + dw < W))
            rows.append(valid.reshape(-1))
    return jnp.stack(rows).astype(jnp.float32)


def xception_block(x_nchw, p, *, start_with_relu=True, downsample=True,
                   stride=1, matmul_dtype=jnp.float32, images_per_step=None):
    # TODO(synk): stride>1 for conv3/shortcut not implemented in-kernel.
    assert stride == 1, "XceptionBlock Pallas kernel currently supports stride=1 only"

    B, Cin, H, W = x_nchw.shape
    S = H * W
    Cout = p["pw1"].shape[1]

    if images_per_step is None:
        images_per_step = B        # one wide slab; set B//2 on v7x for 2 TCs
    assert B % images_per_step == 0
    num_steps = B // images_per_step
    L = images_per_step * S        # lanes per grid step (multiple of 128 here)

    # (B, Cin, H, W) -> (Cin, B*S): channels on sublanes, batch folded into lanes.
    x2 = jnp.transpose(x_nchw.reshape(B, Cin, S), (1, 0, 2)).reshape(Cin, B * S)

    # Border masks tiled per image within one step's chunk; they also kill the
    # roll wrap-around between adjacent images in the concatenated layout.
    masks = jnp.tile(_border_masks(H, W), (1, images_per_step))        # (9, L)

    def dwk(w):            # (3,3,C) -> (C,9), row-major over (kh,kw)
        return jnp.transpose(w, (2, 0, 1)).reshape(w.shape[2], 9)

    wdt = matmul_dtype     # bf16 on v6e/v7x for real channel counts; f32 here
    pw1s = (p["s1"][:, None] * p["pw1"].T).astype(wdt)                 # (Cout, Cin)
    pw2s = (p["s2"][:, None] * p["pw2"].T).astype(wdt)                 # (Cout, Cout)
    pw3s = (p["s3"][:, None] * p["pw3"].T).astype(wdt)                 # (Cout, Cout)
    if downsample:
        scws = (p["ssc"][:, None] * p["scw"].T).astype(wdt)            # (Cout, Cin)
        pw_in = jnp.stack([pw1s, scws])                                # (2, Cout, Cin)
        bsc = p["bsc"]
    else:
        pw_in = pw1s[None]                                             # (1, Cout, Cin)
        bsc = jnp.zeros((Cout,), jnp.float32)
    pw_out = jnp.stack([pw2s, pw3s])                                   # (2, Cout, Cout)
    dw23 = jnp.stack([dwk(p["dw2"]), dwk(p["dw3"])])                   # (2, Cout, 9)
    biases = jnp.stack([p["b1"], p["b2"], p["b3"], bsc], axis=1)       # (Cout, 4)

    args = (x2, masks, dwk(p["dw1"]), dw23, pw_in, pw_out, biases)

    def const_spec(a):     # whole array, resident across the (tiny) grid
        nd = a.ndim
        return pl.BlockSpec(a.shape, lambda i, _nd=nd: (0,) * _nd)

    in_specs = ([pl.BlockSpec((Cin, L), lambda i: (0, i))]
                + [const_spec(a) for a in args[1:]])

    kernel = functools.partial(xception_block_kernel, W=W, L=L,
                               start_with_relu=start_with_relu,
                               downsample=downsample)

    out = pl.pallas_call(
        kernel,
        out_shape=jax.ShapeDtypeStruct((Cout, B * S), jnp.float32),
        grid=(num_steps,),
        in_specs=in_specs,
        out_specs=pl.BlockSpec((Cout, L), lambda i: (0, i)),
        compiler_params=pltpu.CompilerParams(
            dimension_semantics=("parallel",)),
    )(*args)

    # (Cout, B*S) -> NCHW
    return jnp.transpose(out.reshape(Cout, B, S), (1, 0, 2)).reshape(B, Cout, H, W)


# ----------------------- deterministic parameter init -------------------------

def init_params(key, cin, cout):
    ks = jax.random.split(key, 24)

    def bn_fold(kg, kb, km, kv, c):
        gamma = 1.0 + 0.1 * jax.random.normal(kg, (c,), jnp.float32)
        beta = 0.1 * jax.random.normal(kb, (c,), jnp.float32)
        mean = 0.1 * jax.random.normal(km, (c,), jnp.float32)
        var = jnp.abs(jax.random.normal(kv, (c,), jnp.float32)) + 0.5
        scale = gamma * jax.lax.rsqrt(var + 1e-5)
        bias = beta - mean * scale
        return scale, bias

    p = {}
    p["dw1"] = 0.2 * jax.random.normal(ks[0], (3, 3, cin), jnp.float32)
    p["pw1"] = 0.2 * jax.random.normal(ks[1], (cin, cout), jnp.float32)
    p["s1"], p["b1"] = bn_fold(ks[2], ks[3], ks[4], ks[5], cout)
    p["dw2"] = 0.2 * jax.random.normal(ks[6], (3, 3, cout), jnp.float32)
    p["pw2"] = 0.2 * jax.random.normal(ks[7], (cout, cout), jnp.float32)
    p["s2"], p["b2"] = bn_fold(ks[8], ks[9], ks[10], ks[11], cout)
    p["dw3"] = 0.2 * jax.random.normal(ks[12], (3, 3, cout), jnp.float32)
    p["pw3"] = 0.2 * jax.random.normal(ks[13], (cout, cout), jnp.float32)
    p["s3"], p["b3"] = bn_fold(ks[14], ks[15], ks[16], ks[17], cout)
    p["scw"] = 0.2 * jax.random.normal(ks[18], (cin, cout), jnp.float32)
    p["ssc"], p["bsc"] = bn_fold(ks[19], ks[20], ks[21], ks[22], cout)
    return p


# ------------------------------ pure-JAX reference -----------------------------

def reference(x_nchw, p, *, start_with_relu=True, downsample=True):
    x = jnp.transpose(x_nchw, (0, 2, 3, 1)).astype(jnp.float32)

    def dwconv(x, w):  # w: (3,3,C)
        c = x.shape[-1]
        return jax.lax.conv_general_dilated(
            x, w.reshape(3, 3, 1, c), window_strides=(1, 1),
            padding=((1, 1), (1, 1)),
            dimension_numbers=("NHWC", "HWIO", "NHWC"),
            feature_group_count=c)

    def pwconv(x, w):  # w: (Cin,Cout)
        return jax.lax.conv_general_dilated(
            x, w.reshape(1, 1, w.shape[0], w.shape[1]), window_strides=(1, 1),
            padding="VALID", dimension_numbers=("NHWC", "HWIO", "NHWC"))

    residual = x
    if start_with_relu:
        x = jnp.maximum(x, 0.0)
    x = pwconv(dwconv(x, p["dw1"]), p["pw1"]) * p["s1"] + p["b1"]
    x = jnp.maximum(x, 0.0)
    x = pwconv(dwconv(x, p["dw2"]), p["pw2"]) * p["s2"] + p["b2"]
    x = jnp.maximum(x, 0.0)
    x = pwconv(dwconv(x, p["dw3"]), p["pw3"]) * p["s3"] + p["b3"]
    if downsample:
        residual = pwconv(residual, p["scw"]) * p["ssc"] + p["bsc"]
    x = x + residual
    return jnp.transpose(x, (0, 3, 1, 2))


# ------------------------------------ main -------------------------------------

if __name__ == "__main__":
    B, Cin, Cout, H, W = 2, 8, 16, 16, 16
    key = jax.random.PRNGKey(0)
    kx, kp = jax.random.split(key)

    x = jax.random.normal(kx, (B, Cin, H, W), jnp.float32)   # NCHW like PyTorch
    params = init_params(kp, Cin, Cout)

    out = xception_block(x, params, start_with_relu=True, downsample=True)
    out = jax.block_until_ready(out)

    ref = reference(x, params, start_with_relu=True, downsample=True)
    assert out.shape == (B, Cout, H, W), out.shape
    max_err = float(jnp.max(jnp.abs(out - ref)))
    # Tolerance allows for MXU f32 matmul pass decomposition vs XLA conv path.
    assert jnp.allclose(out, ref, rtol=1e-2, atol=1e-2), max_err

    print("KERNEL_OK")
</pallas_src>

<mosaic_0001>
module attributes {stable_mosaic.version = 11 : i64} {
  func.func @xception_block_kernel(%arg0: i32, %arg1: memref<8x512xf32, #tpu.memory_space<vmem>>, %arg2: memref<9x512xf32, #tpu.memory_space<vmem>>, %arg3: memref<8x9xf32, #tpu.memory_space<vmem>>, %arg4: memref<2x16x9xf32, #tpu.memory_space<vmem>>, %arg5: memref<2x16x8xf32, #tpu.memory_space<vmem>>, %arg6: memref<2x16x16xf32, #tpu.memory_space<vmem>>, %arg7: memref<16x4xf32, #tpu.memory_space<vmem>>, %arg8: memref<16x512xf32, #tpu.memory_space<vmem>>) attributes {dimension_semantics = [#tpu.dimension_semantics<parallel>], iteration_bounds = array<i64: 1>, scalar_prefetch = 0 : i64, scratch_operands = 0 : i64, tpu.core_type = #tpu.core_type<tc>, window_params = [{transform_indices = @transform_0, window_bounds = array<i64: 8, 512>}, {pipeline_mode = #tpu.pipeline_mode<synchronous>, transform_indices = @transform_1, window_bounds = array<i64: 9, 512>}, {pipeline_mode = #tpu.pipeline_mode<synchronous>, transform_indices = @transform_2, window_bounds = array<i64: 8, 9>}, {pipeline_mode = #tpu.pipeline_mode<synchronous>, transform_indices = @transform_3, window_bounds = array<i64: 2, 16, 9>}, {pipeline_mode = #tpu.pipeline_mode<synchronous>, transform_indices = @transform_4, window_bounds = array<i64: 2, 16, 8>}, {pipeline_mode = #tpu.pipeline_mode<synchronous>, transform_indices = @transform_5, window_bounds = array<i64: 2, 16, 16>}, {pipeline_mode = #tpu.pipeline_mode<synchronous>, transform_indices = @transform_6, window_bounds = array<i64: 16, 4>}, {transform_indices = @transform_7, window_bounds = array<i64: 16, 512>}]} {
    %c0 = arith.constant 0 : index
    %c0_0 = arith.constant 0 : index
    %0 = vector.load %arg1[%c0, %c0_0] : memref<8x512xf32, #tpu.memory_space<vmem>>, vector<8x512xf32>
    %c0_1 = arith.constant 0 : index
    %c0_2 = arith.constant 0 : index
    %1 = vector.load %arg2[%c0_1, %c0_2] : memref<9x512xf32, #tpu.memory_space<vmem>>, vector<9x512xf32>
    %c0_3 = arith.constant 0 : index
    %c0_4 = arith.constant 0 : index
    %c0_5 = arith.constant 0 : index
    %2 = vector.load %arg4[%c0_3, %c0_4, %c0_5] : memref<2x16x9xf32, #tpu.memory_space<vmem>>, vector<2x16x9xf32>
    %c0_6 = arith.constant 0 : index
    %c0_7 = arith.constant 0 : index
    %c0_8 = arith.constant 0 : index
    %3 = vector.load %arg5[%c0_6, %c0_7, %c0_8] : memref<2x16x8xf32, #tpu.memory_space<vmem>>, vector<2x16x8xf32>
    %c0_9 = arith.constant 0 : index
    %c0_10 = arith.constant 0 : index
    %c0_11 = arith.constant 0 : index
    %4 = vector.load %arg6[%c0_9, %c0_10, %c0_11] : memref<2x16x16xf32, #tpu.memory_space<vmem>>, vector<2x16x16xf32>
    %c0_12 = arith.constant 0 : index
    %c0_13 = arith.constant 0 : index
    %5 = vector.load %arg7[%c0_12, %c0_13] : memref<16x4xf32, #tpu.memory_space<vmem>>, vector<16x4xf32>
    %cst = arith.constant 0.000000e+00 : f32
    %6 = vector.broadcast %cst : f32 to vector<8x512xf32>
    %7 = arith.maximumf %0, %6 : vector<8x512xf32>
    %c0_14 = arith.constant 0 : index
    %c0_15 = arith.constant 0 : index
    %8 = vector.load %arg3[%c0_14, %c0_15] : memref<8x9xf32, #tpu.memory_space<vmem>>, vector<8x9xf32>
    %9 = vector.extract_strided_slice %8 {offsets = [0, 4], sizes = [8, 1], strides = [1, 1]} : vector<8x9xf32> to vector<8x1xf32>
    %10 = vector.broadcast %9 : vector<8x1xf32> to vector<8x512xf32>
    %11 = arith.mulf %7, %10 : vector<8x512xf32>
    %c17_i32 = arith.constant 17 : i32
    %12 = tpu.dynamic_rotate %7 by %c17_i32 dim 1 : vector<8x512xf32>, i32 -> vector<8x512xf32>
    %13 = vector.extract_strided_slice %1 {offsets = [0, 0], sizes = [1, 512], strides = [1, 1]} : vector<9x512xf32> to vector<1x512xf32>
    %14 = vector.broadcast %13 : vector<1x512xf32> to vector<8x512xf32>
    %15 = arith.mulf %12, %14 : vector<8x512xf32>
    %16 = vector.extract_strided_slice %8 {offsets = [0, 0], sizes = [8, 1], strides = [1, 1]} : vector<8x9xf32> to vector<8x1xf32>
    %17 = vector.broadcast %16 : vector<8x1xf32> to vector<8x512xf32>
    %18 = arith.mulf %15, %17 : vector<8x512xf32>
    %c16_i32 = arith.constant 16 : i32
    %19 = tpu.dynamic_rotate %7 by %c16_i32 dim 1 : vector<8x512xf32>, i32 -> vector<8x512xf32>
    %20 = vector.extract_strided_slice %1 {offsets = [1, 0], sizes = [1, 512], strides = [1, 1]} : vector<9x512xf32> to vector<1x512xf32>
    %21 = vector.broadcast %20 : vector<1x512xf32> to vector<8x512xf32>
    %22 = arith.mulf %19, %21 : vector<8x512xf32>
    %23 = vector.extract_strided_slice %8 {offsets = [0, 1], sizes = [8, 1], strides = [1, 1]} : vector<8x9xf32> to vector<8x1xf32>
    %24 = vector.broadcast %23 : vector<8x1xf32> to vector<8x512xf32>
    %25 = arith.mulf %22, %24 : vector<8x512xf32>
    %c15_i32 = arith.constant 15 : i32
    %26 = tpu.dynamic_rotate %7 by %c15_i32 dim 1 : vector<8x512xf32>, i32 -> vector<8x512xf32>
    %27 = vector.extract_strided_slice %1 {offsets = [2, 0], sizes = [1, 512], strides = [1, 1]} : vector<9x512xf32> to vector<1x512xf32>
    %28 = vector.broadcast %27 : vector<1x512xf32> to vector<8x512xf32>
    %29 = arith.mulf %26, %28 : vector<8x512xf32>
    %30 = vector.extract_strided_slice %8 {offsets = [0, 2], sizes = [8, 1], strides = [1, 1]} : vector<8x9xf32> to vector<8x1xf32>
    %31 = vector.broadcast %30 : vector<8x1xf32> to vector<8x512xf32>
    %32 = arith.mulf %29, %31 : vector<8x512xf32>
    %c1_i32 = arith.constant 1 : i32
    %33 = tpu.dynamic_rotate %7 by %c1_i32 dim 1 : vector<8x512xf32>, i32 -> vector<8x512xf32>
    %34 = vector.extract_strided_slice %1 {offsets = [3, 0], sizes = [1, 512], strides = [1, 1]} : vector<9x512xf32> to vector<1x512xf32>
    %35 = vector.broadcast %34 : vector<1x512xf32> to vector<8x512xf32>
    %36 = arith.mulf %33, %35 : vector<8x512xf32>
    %37 = vector.extract_strided_slice %8 {offsets = [0, 3], sizes = [8, 1], strides = [1, 1]} : vector<8x9xf32> to vector<8x1xf32>
    %38 = vector.broadcast %37 : vector<8x1xf32> to vector<8x512xf32>
    %39 = arith.mulf %36, %38 : vector<8x512xf32>
    %c511_i32 = arith.constant 511 : i32
    %40 = tpu.dynamic_rotate %7 by %c511_i32 dim 1 : vector<8x512xf32>, i32 -> vector<8x512xf32>
    %41 = vector.extract_strided_slice %1 {offsets = [5, 0], sizes = [1, 512], strides = [1, 1]} : vector<9x512xf32> to vector<1x512xf32>
    %42 = vector.broadcast %41 : vector<1x512xf32> to vector<8x512xf32>
    %43 = arith.mulf %40, %42 : vector<8x512xf32>
    %44 = vector.extract_strided_slice %8 {offsets = [0, 5], sizes = [8, 1], strides = [1, 1]} : vector<8x9xf32> to vector<8x1xf32>
    %45 = vector.broadcast %44 : vector<8x1xf32> to vector<8x512xf32>
    %46 = arith.mulf %43, %45 : vector<8x512xf32>
    %c497_i32 = arith.constant 497 : i32
    %47 = tpu.dynamic_rotate %7 by %c497_i32 dim 1 : vector<8x512xf32>, i32 -> vector<8x512xf32>
    %48 = vector.extract_strided_slice %1 {offsets = [6, 0], sizes = [1, 512], strides = [1, 1]} : vector<9x512xf32> to vector<1x512xf32>
    %49 = vector.broadcast %48 : vector<1x512xf32> to vector<8x512xf32>
    %50 = arith.mulf %47, %49 : vector<8x512xf32>
    %51 = vector.extract_strided_slice %8 {offsets = [0, 6], sizes = [8, 1], strides = [1, 1]} : vector<8x9xf32> to vector<8x1xf32>
    %52 = vector.broadcast %51 : vector<8x1xf32> to vector<8x512xf32>
    %53 = arith.mulf %50, %52 : vector<8x512xf32>
    %c496_i32 = arith.constant 496 : i32
    %54 = tpu.dynamic_rotate %7 by %c496_i32 dim 1 : vector<8x512xf32>, i32 -> vector<8x512xf32>
    %55 = vector.extract_strided_slice %1 {offsets = [7, 0], sizes = [1, 512], strides = [1, 1]} : vector<9x512xf32> to vector<1x512xf32>
    %56 = vector.broadcast %55 : vector<1x512xf32> to vector<8x512xf32>
    %57 = arith.mulf %54, %56 : vector<8x512xf32>
    %58 = vector.extract_strided_slice %8 {offsets = [0, 7], sizes = [8, 1], strides = [1, 1]} : vector<8x9xf32> to vector<8x1xf32>
    %59 = vector.broadcast %58 : vector<8x1xf32> to vector<8x512xf32>
    %60 = arith.mulf %57, %59 : vector<8x512xf32>
    %c495_i32 = arith.constant 495 : i32
    %61 = tpu.dynamic_rotate %7 by %c495_i32 dim 1 : vector<8x512xf32>, i32 -> vector<8x512xf32>
    %62 = vector.extract_strided_slice %1 {offsets = [8, 0], sizes = [1, 512], strides = [1, 1]} : vector<9x512xf32> to vector<1x512xf32>
    %63 = vector.broadcast %62 : vector<1x512xf32> to vector<8x512xf32>
    %64 = arith.mulf %61, %63 : vector<8x512xf32>
    %65 = vector.extract_strided_slice %8 {offsets = [0, 8], sizes = [8, 1], strides = [1, 1]} : vector<8x9xf32> to vector<8x1xf32>
    %66 = vector.broadcast %65 : vector<8x1xf32> to vector<8x512xf32>
    %67 = arith.mulf %64, %66 : vector<8x512xf32>
    %68 = arith.addf %11, %18 : vector<8x512xf32>
    %69 = arith.addf %25, %32 : vector<8x512xf32>
    %70 = arith.addf %39, %46 : vector<8x512xf32>
    %71 = arith.addf %53, %60 : vector<8x512xf32>
    %72 = arith.addf %68, %69 : vector<8x512xf32>
    %73 = arith.addf %70, %71 : vector<8x512xf32>
    %74 = arith.addf %72, %73 : vector<8x512xf32>
    %75 = arith.addf %74, %67 : vector<8x512xf32>
    %76 = vector.extract_strided_slice %3 {offsets = [0, 0, 0], sizes = [1, 16, 8], strides = [1, 1, 1]} : vector<2x16x8xf32> to vector<1x16x8xf32>
    %77 = vector.shape_cast %76 : vector<1x16x8xf32> to vector<16x8xf32>
    %cst_16 = arith.constant dense<0.000000e+00> : vector<16x512xf32>
    %78 = tpu.matmul %77, %75, %cst_16 {dimension_numbers = #tpu.dot_dimension_numbers<[1], [0], [0], [1], [0, 0, 1, 1], [], []>} : vector<16x8xf32>, vector<8x512xf32>, vector<16x512xf32> -> vector<16x512xf32>
    %79 = vector.extract_strided_slice %5 {offsets = [0, 0], sizes = [16, 1], strides = [1, 1]} : vector<16x4xf32> to vector<16x1xf32>
    %80 = vector.broadcast %79 : vector<16x1xf32> to vector<16x512xf32>
    %81 = arith.addf %78, %80 : vector<16x512xf32>
    %cst_17 = arith.constant 0.000000e+00 : f32
    %82 = vector.broadcast %cst_17 : f32 to vector<16x512xf32>
    %83 = arith.maximumf %81, %82 : vector<16x512xf32>
    %84 = vector.extract_strided_slice %2 {offsets = [0, 0, 0], sizes = [1, 16, 9], strides = [1, 1, 1]} : vector<2x16x9xf32> to vector<1x16x9xf32>
    %85 = vector.shape_cast %84 : vector<1x16x9xf32> to vector<16x9xf32>
    %86 = vector.extract_strided_slice %85 {offsets = [0, 4], sizes = [16, 1], strides = [1, 1]} : vector<16x9xf32> to vector<16x1xf32>
    %87 = vector.broadcast %86 : vector<16x1xf32> to vector<16x512xf32>
    %88 = arith.mulf %83, %87 : vector<16x512xf32>
    %c17_i32_18 = arith.constant 17 : i32
    %89 = tpu.dynamic_rotate %83 by %c17_i32_18 dim 1 : vector<16x512xf32>, i32 -> vector<16x512xf32>
    %90 = vector.extract_strided_slice %1 {offsets = [0, 0], sizes = [1, 512], strides = [1, 1]} : vector<9x512xf32> to vector<1x512xf32>
    %91 = vector.broadcast %90 : vector<1x512xf32> to vector<16x512xf32>
    %92 = arith.mulf %89, %91 : vector<16x512xf32>
    %93 = vector.extract_strided_slice %85 {offsets = [0, 0], sizes = [16, 1], strides = [1, 1]} : vector<16x9xf32> to vector<16x1xf32>
    %94 = vector.broadcast %93 : vector<16x1xf32> to vector<16x512xf32>
    %95 = arith.mulf %92, %94 : vector<16x512xf32>
    %c16_i32_19 = arith.constant 16 : i32
    %96 = tpu.dynamic_rotate %83 by %c16_i32_19 dim 1 : vector<16x512xf32>, i32 -> vector<16x512xf32>
    %97 = vector.extract_strided_slice %1 {offsets = [1, 0], sizes = [1, 512], strides = [1, 1]} : vector<9x512xf32> to vector<1x512xf32>
    %98 = vector.broadcast %97 : vector<1x512xf32> to vector<16x512xf32>
    %99 = arith.mulf %96, %98 : vector<16x512xf32>
    %100 = vector.extract_strided_slice %85 {offsets = [0, 1], sizes = [16, 1], strides = [1, 1]} : vector<16x9xf32> to vector<16x1xf32>
    %101 = vector.broadcast %100 : vector<16x1xf32> to vector<16x512xf32>
    %102 = arith.mulf %99, %101 : vector<16x512xf32>
    %c15_i32_20 = arith.constant 15 : i32
    %103 = tpu.dynamic_rotate %83 by %c15_i32_20 dim 1 : vector<16x512xf32>, i32 -> vector<16x512xf32>
    %104 = vector.extract_strided_slice %1 {offsets = [2, 0], sizes = [1, 512], strides = [1, 1]} : vector<9x512xf32> to vector<1x512xf32>
    %105 = vector.broadcast %104 : vector<1x512xf32> to vector<16x512xf32>
    %106 = arith.mulf %103, %105 : vector<16x512xf32>
    %107 = vector.extract_strided_slice %85 {offsets = [0, 2], sizes = [16, 1], strides = [1, 1]} : vector<16x9xf32> to vector<16x1xf32>
    %108 = vector.broadcast %107 : vector<16x1xf32> to vector<16x512xf32>
    %109 = arith.mulf %106, %108 : vector<16x512xf32>
    %c1_i32_21 = arith.constant 1 : i32
    %110 = tpu.dynamic_rotate %83 by %c1_i32_21 dim 1 : vector<16x512xf32>, i32 -> vector<16x512xf32>
    %111 = vector.extract_strided_slice %1 {offsets = [3, 0], sizes = [1, 512], strides = [1, 1]} : vector<9x512xf32> to vector<1x512xf32>
    %112 = vector.broadcast %111 : vector<1x512xf32> to vector<16x512xf32>
    %113 = arith.mulf %110, %112 : vector<16x512xf32>
    %114 = vector.extract_strided_slice %85 {offsets = [0, 3], sizes = [16, 1], strides = [1, 1]} : vector<16x9xf32> to vector<16x1xf32>
    %115 = vector.broadcast %114 : vector<16x1xf32> to vector<16x512xf32>
    %116 = arith.mulf %113, %115 : vector<16x512xf32>
    %c511_i32_22 = arith.constant 511 : i32
    %117 = tpu.dynamic_rotate %83 by %c511_i32_22 dim 1 : vector<16x512xf32>, i32 -> vector<16x512xf32>
    %118 = vector.extract_strided_slice %1 {offsets = [5, 0], sizes = [1, 512], strides = [1, 1]} : vector<9x512xf32> to vector<1x512xf32>
    %119 = vector.broadcast %118 : vector<1x512xf32> to vector<16x512xf32>
    %120 = arith.mulf %117, %119 : vector<16x512xf32>
    %121 = vector.extract_strided_slice %85 {offsets = [0, 5], sizes = [16, 1], strides = [1, 1]} : vector<16x9xf32> to vector<16x1xf32>
    %122 = vector.broadcast %121 : vector<16x1xf32> to vector<16x512xf32>
    %123 = arith.mulf %120, %122 : vector<16x512xf32>
    %c497_i32_23 = arith.constant 497 : i32
    %124 = tpu.dynamic_rotate %83 by %c497_i32_23 dim 1 : vector<16x512xf32>, i32 -> vector<16x512xf32>
    %125 = vector.extract_strided_slice %1 {offsets = [6, 0], sizes = [1, 512], strides = [1, 1]} : vector<9x512xf32> to vector<1x512xf32>
    %126 = vector.broadcast %125 : vector<1x512xf32> to vector<16x512xf32>
    %127 = arith.mulf %124, %126 : vector<16x512xf32>
    %128 = vector.extract_strided_slice %85 {offsets = [0, 6], sizes = [16, 1], strides = [1, 1]} : vector<16x9xf32> to vector<16x1xf32>
    %129 = vector.broadcast %128 : vector<16x1xf32> to vector<16x512xf32>
    %130 = arith.mulf %127, %129 : vector<16x512xf32>
    %c496_i32_24 = arith.constant 496 : i32
    %131 = tpu.dynamic_rotate %83 by %c496_i32_24 dim 1 : vector<16x512xf32>, i32 -> vector<16x512xf32>
    %132 = vector.extract_strided_slice %1 {offsets = [7, 0], sizes = [1, 512], strides = [1, 1]} : vector<9x512xf32> to vector<1x512xf32>
    %133 = vector.broadcast %132 : vector<1x512xf32> to vector<16x512xf32>
    %134 = arith.mulf %131, %133 : vector<16x512xf32>
    %135 = vector.extract_strided_slice %85 {offsets = [0, 7], sizes = [16, 1], strides = [1, 1]} : vector<16x9xf32> to vector<16x1xf32>
    %136 = vector.broadcast %135 : vector<16x1xf32> to vector<16x512xf32>
    %137 = arith.mulf %134, %136 : vector<16x512xf32>
    %c495_i32_25 = arith.constant 495 : i32
    %138 = tpu.dynamic_rotate %83 by %c495_i32_25 dim 1 : vector<16x512xf32>, i32 -> vector<16x512xf32>
    %139 = vector.extract_strided_slice %1 {offsets = [8, 0], sizes = [1, 512], strides = [1, 1]} : vector<9x512xf32> to vector<1x512xf32>
    %140 = vector.broadcast %139 : vector<1x512xf32> to vector<16x512xf32>
    %141 = arith.mulf %138, %140 : vector<16x512xf32>
    %142 = vector.extract_strided_slice %85 {offsets = [0, 8], sizes = [16, 1], strides = [1, 1]} : vector<16x9xf32> to vector<16x1xf32>
    %143 = vector.broadcast %142 : vector<16x1xf32> to vector<16x512xf32>
    %144 = arith.mulf %141, %143 : vector<16x512xf32>
    %145 = arith.addf %88, %95 : vector<16x512xf32>
    %146 = arith.addf %102, %109 : vector<16x512xf32>
    %147 = arith.addf %116, %123 : vector<16x512xf32>
    %148 = arith.addf %130, %137 : vector<16x512xf32>
    %149 = arith.addf %145, %146 : vector<16x512xf32>
    %150 = arith.addf %147, %148 : vector<16x512xf32>
    %151 = arith.addf %149, %150 : vector<16x512xf32>
    %152 = arith.addf %151, %144 : vector<16x512xf32>
    %153 = vector.extract_strided_slice %4 {offsets = [0, 0, 0], sizes = [1, 16, 16], strides = [1, 1, 1]} : vector<2x16x16xf32> to vector<1x16x16xf32>
    %154 = vector.shape_cast %153 : vector<1x16x16xf32> to vector<16x16xf32>
    %cst_26 = arith.constant dense<0.000000e+00> : vector<16x512xf32>
    %155 = tpu.matmul %154, %152, %cst_26 {dimension_numbers = #tpu.dot_dimension_numbers<[1], [0], [0], [1], [0, 0, 1, 1], [], []>} : vector<16x16xf32>, vector<16x512xf32>, vector<16x512xf32> -> vector<16x512xf32>
    %156 = vector.extract_strided_slice %5 {offsets = [0, 1], sizes = [16, 1], strides = [1, 1]} : vector<16x4xf32> to vector<16x1xf32>
    %157 = vector.broadcast %156 : vector<16x1xf32> to vector<16x512xf32>
    %158 = arith.addf %155, %157 : vector<16x512xf32>
    %cst_27 = arith.constant 0.000000e+00 : f32
    %159 = vector.broadcast %cst_27 : f32 to vector<16x512xf32>
    %160 = arith.maximumf %158, %159 : vector<16x512xf32>
    %161 = vector.extract_strided_slice %2 {offsets = [1, 0, 0], sizes = [1, 16, 9], strides = [1, 1, 1]} : vector<2x16x9xf32> to vector<1x16x9xf32>
    %162 = vector.shape_cast %161 : vector<1x16x9xf32> to vector<16x9xf32>
    %163 = vector.extract_strided_slice %162 {offsets = [0, 4], sizes = [16, 1], strides = [1, 1]} : vector<16x9xf32> to vector<16x1xf32>
    %164 = vector.broadcast %163 : vector<16x1xf32> to vector<16x512xf32>
    %165 = arith.mulf %160, %164 : vector<16x512xf32>
    %c17_i32_28 = arith.constant 17 : i32
    %166 = tpu.dynamic_rotate %160 by %c17_i32_28 dim 1 : vector<16x512xf32>, i32 -> vector<16x512xf32>
    %167 = vector.extract_strided_slice %1 {offsets = [0, 0], sizes = [1, 512], strides = [1, 1]} : vector<9x512xf32> to vector<1x512xf32>
    %168 = vector.broadcast %167 : vector<1x512xf32> to vector<16x512xf32>
    %169 = arith.mulf %166, %168 : vector<16x512xf32>
    %170 = vector.extract_strided_slice %162 {offsets = [0, 0], sizes = [16, 1], strides = [1, 1]} : vector<16x9xf32> to vector<16x1xf32>
    %171 = vector.broadcast %170 : vector<16x1xf32> to vector<16x512xf32>
    %172 = arith.mulf %169, %171 : vector<16x512xf32>
    %c16_i32_29 = arith.constant 16 : i32
    %173 = tpu.dynamic_rotate %160 by %c16_i32_29 dim 1 : vector<16x512xf32>, i32 -> vector<16x512xf32>
    %174 = vector.extract_strided_slice %1 {offsets = [1, 0], sizes = [1, 512], strides = [1, 1]} : vector<9x512xf32> to vector<1x512xf32>
    %175 = vector.broadcast %174 : vector<1x512xf32> to vector<16x512xf32>
    %176 = arith.mulf %173, %175 : vector<16x512xf32>
    %177 = vector.extract_strided_slice %162 {offsets = [0, 1], sizes = [16, 1], strides = [1, 1]} : vector<16x9xf32> to vector<16x1xf32>
    %178 = vector.broadcast %177 : vector<16x1xf32> to vector<16x512xf32>
    %179 = arith.mulf %176, %178 : vector<16x512xf32>
    %c15_i32_30 = arith.constant 15 : i32
    %180 = tpu.dynamic_rotate %160 by %c15_i32_30 dim 1 : vector<16x512xf32>, i32 -> vector<16x512xf32>
    %181 = vector.extract_strided_slice %1 {offsets = [2, 0], sizes = [1, 512], strides = [1, 1]} : vector<9x512xf32> to vector<1x512xf32>
    %182 = vector.broadcast %181 : vector<1x512xf32> to vector<16x512xf32>
    %183 = arith.mulf %180, %182 : vector<16x512xf32>
    %184 = vector.extract_strided_slice %162 {offsets = [0, 2], sizes = [16, 1], strides = [1, 1]} : vector<16x9xf32> to vector<16x1xf32>
    %185 = vector.broadcast %184 : vector<16x1xf32> to vector<16x512xf32>
    %186 = arith.mulf %183, %185 : vector<16x512xf32>
    %c1_i32_31 = arith.constant 1 : i32
    %187 = tpu.dynamic_rotate %160 by %c1_i32_31 dim 1 : vector<16x512xf32>, i32 -> vector<16x512xf32>
    %188 = vector.extract_strided_slice %1 {offsets = [3, 0], sizes = [1, 512], strides = [1, 1]} : vector<9x512xf32> to vector<1x512xf32>
    %189 = vector.broadcast %188 : vector<1x512xf32> to vector<16x512xf32>
    %190 = arith.mulf %187, %189 : vector<16x512xf32>
    %191 = vector.extract_strided_slice %162 {offsets = [0, 3], sizes = [16, 1], strides = [1, 1]} : vector<16x9xf32> to vector<16x1xf32>
    %192 = vector.broadcast %191 : vector<16x1xf32> to vector<16x512xf32>
    %193 = arith.mulf %190, %192 : vector<16x512xf32>
    %c511_i32_32 = arith.constant 511 : i32
    %194 = tpu.dynamic_rotate %160 by %c511_i32_32 dim 1 : vector<16x512xf32>, i32 -> vector<16x512xf32>
    %195 = vector.extract_strided_slice %1 {offsets = [5, 0], sizes = [1, 512], strides = [1, 1]} : vector<9x512xf32> to vector<1x512xf32>
    %196 = vector.broadcast %195 : vector<1x512xf32> to vector<16x512xf32>
    %197 = arith.mulf %194, %196 : vector<16x512xf32>
    %198 = vector.extract_strided_slice %162 {offsets = [0, 5], sizes = [16, 1], strides = [1, 1]} : vector<16x9xf32> to vector<16x1xf32>
    %199 = vector.broadcast %198 : vector<16x1xf32> to vector<16x512xf32>
    %200 = arith.mulf %197, %199 : vector<16x512xf32>
    %c497_i32_33 = arith.constant 497 : i32
    %201 = tpu.dynamic_rotate %160 by %c497_i32_33 dim 1 : vector<16x512xf32>, i32 -> vector<16x512xf32>
    %202 = vector.extract_strided_slice %1 {offsets = [6, 0], sizes = [1, 512], strides = [1, 1]} : vector<9x512xf32> to vector<1x512xf32>
    %203 = vector.broadcast %202 : vector<1x512xf32> to vector<16x512xf32>
    %204 = arith.mulf %201, %203 : vector<16x512xf32>
    %205 = vector.extract_strided_slice %162 {offsets = [0, 6], sizes = [16, 1], strides = [1, 1]} : vector<16x9xf32> to vector<16x1xf32>
    %206 = vector.broadcast %205 : vector<16x1xf32> to vector<16x512xf32>
    %207 = arith.mulf %204, %206 : vector<16x512xf32>
    %c496_i32_34 = arith.constant 496 : i32
    %208 = tpu.dynamic_rotate %160 by %c496_i32_34 dim 1 : vector<16x512xf32>, i32 -> vector<16x512xf32>
    %209 = vector.extract_strided_slice %1 {offsets = [7, 0], sizes = [1, 512], strides = [1, 1]} : vector<9x512xf32> to vector<1x512xf32>
    %210 = vector.broadcast %209 : vector<1x512xf32> to vector<16x512xf32>
    %211 = arith.mulf %208, %210 : vector<16x512xf32>
    %212 = vector.extract_strided_slice %162 {offsets = [0, 7], sizes = [16, 1], strides = [1, 1]} : vector<16x9xf32> to vector<16x1xf32>
    %213 = vector.broadcast %212 : vector<16x1xf32> to vector<16x512xf32>
    %214 = arith.mulf %211, %213 : vector<16x512xf32>
    %c495_i32_35 = arith.constant 495 : i32
    %215 = tpu.dynamic_rotate %160 by %c495_i32_35 dim 1 : vector<16x512xf32>, i32 -> vector<16x512xf32>
    %216 = vector.extract_strided_slice %1 {offsets = [8, 0], sizes = [1, 512], strides = [1, 1]} : vector<9x512xf32> to vector<1x512xf32>
    %217 = vector.broadcast %216 : vector<1x512xf32> to vector<16x512xf32>
    %218 = arith.mulf %215, %217 : vector<16x512xf32>
    %219 = vector.extract_strided_slice %162 {offsets = [0, 8], sizes = [16, 1], strides = [1, 1]} : vector<16x9xf32> to vector<16x1xf32>
    %220 = vector.broadcast %219 : vector<16x1xf32> to vector<16x512xf32>
    %221 = arith.mulf %218, %220 : vector<16x512xf32>
    %222 = arith.addf %165, %172 : vector<16x512xf32>
    %223 = arith.addf %179, %186 : vector<16x512xf32>
    %224 = arith.addf %193, %200 : vector<16x512xf32>
    %225 = arith.addf %207, %214 : vector<16x512xf32>
    %226 = arith.addf %222, %223 : vector<16x512xf32>
    %227 = arith.addf %224, %225 : vector<16x512xf32>
    %228 = arith.addf %226, %227 : vector<16x512xf32>
    %229 = arith.addf %228, %221 : vector<16x512xf32>
    %230 = vector.extract_strided_slice %4 {offsets = [1, 0, 0], sizes = [1, 16, 16], strides = [1, 1, 1]} : vector<2x16x16xf32> to vector<1x16x16xf32>
    %231 = vector.shape_cast %230 : vector<1x16x16xf32> to vector<16x16xf32>
    %cst_36 = arith.constant dense<0.000000e+00> : vector<16x512xf32>
    %232 = tpu.matmul %231, %229, %cst_36 {dimension_numbers = #tpu.dot_dimension_numbers<[1], [0], [0], [1], [0, 0, 1, 1], [], []>} : vector<16x16xf32>, vector<16x512xf32>, vector<16x512xf32> -> vector<16x512xf32>
    %233 = vector.extract_strided_slice %5 {offsets = [0, 2], sizes = [16, 1], strides = [1, 1]} : vector<16x4xf32> to vector<16x1xf32>
    %234 = vector.broadcast %233 : vector<16x1xf32> to vector<16x512xf32>
    %235 = arith.addf %232, %234 : vector<16x512xf32>
    %236 = vector.extract_strided_slice %3 {offsets = [1, 0, 0], sizes = [1, 16, 8], strides = [1, 1, 1]} : vector<2x16x8xf32> to vector<1x16x8xf32>
    %237 = vector.shape_cast %236 : vector<1x16x8xf32> to vector<16x8xf32>
    %cst_37 = arith.constant dense<0.000000e+00> : vector<16x512xf32>
    %238 = tpu.matmul %237, %0, %cst_37 {dimension_numbers = #tpu.dot_dimension_numbers<[1], [0], [0], [1], [0, 0, 1, 1], [], []>} : vector<16x8xf32>, vector<8x512xf32>, vector<16x512xf32> -> vector<16x512xf32>
    %239 = vector.extract_strided_slice %5 {offsets = [0, 3], sizes = [16, 1], strides = [1, 1]} : vector<16x4xf32> to vector<16x1xf32>
    %240 = vector.broadcast %239 : vector<16x1xf32> to vector<16x512xf32>
    %241 = arith.addf %238, %240 : vector<16x512xf32>
    %242 = arith.addf %235, %241 : vector<16x512xf32>
    %c0_38 = arith.constant 0 : index
    %c0_39 = arith.constant 0 : index
    %243 = vector.load %arg8[%c0_38, %c0_39] : memref<16x512xf32, #tpu.memory_space<vmem>>, vector<16x512xf32>
    tpu.vector_store %arg8[%c0_38, %c0_39], %242 {strides = array<i32>} : memref<16x512xf32, #tpu.memory_space<vmem>>, vector<16x512xf32>,
    return
  }
  func.func @transform_0(%arg0: i32) -> (i32, i32) {
    %c0_i32 = arith.constant 0 : i32
    %c0_i32_0 = arith.constant 0 : i32
    return %c0_i32, %arg0 : i32, i32
  }
  func.func @transform_1(%arg0: i32) -> (i32, i32) {
    %c0_i32 = arith.constant 0 : i32
    %c0_i32_0 = arith.constant 0 : i32
    %c0_i32_1 = arith.constant 0 : i32
    return %c0_i32, %c0_i32_0 : i32, i32
  }
  func.func @transform_2(%arg0: i32) -> (i32, i32) {
    %c0_i32 = arith.constant 0 : i32
    %c0_i32_0 = arith.constant 0 : i32
    %c0_i32_1 = arith.constant 0 : i32
    return %c0_i32, %c0_i32_0 : i32, i32
  }
  func.func @transform_3(%arg0: i32) -> (i32, i32, i32) {
    %c0_i32 = arith.constant 0 : i32
    %c0_i32_0 = arith.constant 0 : i32
    %c0_i32_1 = arith.constant 0 : i32
    %c0_i32_2 = arith.constant 0 : i32
    return %c0_i32, %c0_i32_0, %c0_i32_1 : i32, i32, i32
  }
  func.func @transform_4(%arg0: i32) -> (i32, i32, i32) {
    %c0_i32 = arith.constant 0 : i32
    %c0_i32_0 = arith.constant 0 : i32
    %c0_i32_1 = arith.constant 0 : i32
    %c0_i32_2 = arith.constant 0 : i32
    return %c0_i32, %c0_i32_0, %c0_i32_1 : i32, i32, i32
  }
  func.func @transform_5(%arg0: i32) -> (i32, i32, i32) {
    %c0_i32 = arith.constant 0 : i32
    %c0_i32_0 = arith.constant 0 : i32
    %c0_i32_1 = arith.constant 0 : i32
    %c0_i32_2 = arith.constant 0 : i32
    return %c0_i32, %c0_i32_0, %c0_i32_1 : i32, i32, i32
  }
  func.func @transform_6(%arg0: i32) -> (i32, i32) {
    %c0_i32 = arith.constant 0 : i32
    %c0_i32_0 = arith.constant 0 : i32
    %c0_i32_1 = arith.constant 0 : i32
    return %c0_i32, %c0_i32_0 : i32, i32
  }
  func.func @transform_7(%arg0: i32) -> (i32, i32) {
    %c0_i32 = arith.constant 0 : i32
    %c0_i32_0 = arith.constant 0 : i32
    return %c0_i32, %arg0 : i32, i32
  }
}

</mosaic_0001>

<llo_original>
// kernel: tpu_custom_call.1
$region0: #{tpu_custom_call.1}
  #allocation0 [shape = 'u32[]', space=smem, size = 0x4, offset = 0x4, fixed_abs, tag = 'smem constant byte address 0x4 - core index']
  #allocation1 [shape = 'u32[144,128]{1,0:T(1,128)}', space=vmem, size = 0x12000, scoped, tag = 'internal scratch']
  %s0 = inlined_call_operand.vmem [shape: f32[8,512], index: 0, kind: input, shape index: {}]
  %s1 = inlined_call_operand.vmem [shape: f32[9,512], index: 1, kind: input, shape index: {}]
  %s2 = inlined_call_operand.hbm [shape: f32[8,9], index: 2, kind: input, shape index: {}]
  %s3 = inlined_call_operand.vmem [shape: f32[2,16,9], index: 3, kind: input, shape index: {}]
  %s4 = inlined_call_operand.vmem [shape: f32[2,16,8], index: 4, kind: input, shape index: {}]
  %s5 = inlined_call_operand.vmem [shape: f32[2,16,16], index: 5, kind: input, shape index: {}]
  %s6 = inlined_call_operand.vmem [shape: f32[16,4], index: 6, kind: input, shape index: {}]
  %s7 = inlined_call_operand.hbm [shape: f32[16,512], index: 7, kind: output, shape index: {}]
  %s8 = sld [smem:[#allocation0]]
  $region42: #{tpu_custom_call.1} parent=0
    _
  %s10 = ssub.s32 1, %s8
  %s11 = scalar_select 0, %s10, %s8
  $region1: #{tpu_custom_call.1} parent=0
    #allocation2 [shape = 'u8[4096]{0}', space=vmem, size = 0x1000, scoped, tag = 'input window, operand 2, single buffered']
    #allocation3 [shape = 's32[1]{0}', space=sflag, size = 0x4, scoped, tag = 'scoped memory for tpu_custom_call.1']
    #allocation4 [shape = 's32[1]{0}', space=sflag, size = 0x4, scoped, tag = 'scoped memory for tpu_custom_call.1']
    #allocation5 [shape = 'u8[32768]{0}', space=vmem, size = 0x8000, scoped, tag = 'output window, operand 0, single buffered']
    %12 = vsyncpa [#allocation3], 0
    %13 = vsyncpa [#allocation4], 0
    // Predicated region
    $region2: #{tpu_custom_call.1} parent=1 // pred_check
      _
    $region3: #{tpu_custom_call.1} parent=1 // pred_check_branch
      %15 = sbr.rel (0) target = $region5
    $region4: #{tpu_custom_call.1} parent=1 // pred_region
      _
    $region5: #{tpu_custom_call.1} parent=1 // pred_fallthru
      _
    // Predicated region
    $region6: #{tpu_custom_call.1} parent=1 // pred_check
      _
    $region7: #{tpu_custom_call.1} parent=1 // pred_check_branch
      %17 = sbr.rel (0) target = $region9
    $region8: #{tpu_custom_call.1} parent=1 // pred_region
      _
    $region9: #{tpu_custom_call.1} parent=1 // pred_fallthru
      _
    // Predicated region
    $region10: #{tpu_custom_call.1} parent=1 // pred_check
      _
    $region11: #{tpu_custom_call.1} parent=1 // pred_check_branch
      %19 = sbr.rel (0) target = $region13
    $region12: #{tpu_custom_call.1} parent=1 // pred_region
      %s21 = ssub.s32 128, 128
      %22 = vsyncadd [#allocation3], %s21
      %s24 = sshll.u32 [#allocation2], 4
      %s25 = int_to_ptr.vmem [resolvable:$true] %s24
      %27 = dma.hbm_to_vmem [thread:$0]  %s2, 128, %s25, [#allocation3]
    $region13: #{tpu_custom_call.1} parent=1 // pred_fallthru
      _
    // Predicated region
    $region14: #{tpu_custom_call.1} parent=1 // pred_check
      _
    $region15: #{tpu_custom_call.1} parent=1 // pred_check_branch
      %29 = sbr.rel (0) target = $region17
    $region16: #{tpu_custom_call.1} parent=1 // pred_region
      _
    $region17: #{tpu_custom_call.1} parent=1 // pred_fallthru
      _
    // Predicated region
    $region18: #{tpu_custom_call.1} parent=1 // pred_check
      _
    $region19: #{tpu_custom_call.1} parent=1 // pred_check_branch
      %31 = sbr.rel (0) target = $region21
    $region20: #{tpu_custom_call.1} parent=1 // pred_region
      _
    $region21: #{tpu_custom_call.1} parent=1 // pred_fallthru
      _
    // Predicated region
    $region22: #{tpu_custom_call.1} parent=1 // pred_check
      _
    $region23: #{tpu_custom_call.1} parent=1 // pred_check_branch
      %33 = sbr.rel (0) target = $region25
    $region24: #{tpu_custom_call.1} parent=1 // pred_region
      _
    $region25: #{tpu_custom_call.1} parent=1 // pred_fallthru
      _
    // Predicated region
    $region26: #{tpu_custom_call.1} parent=1 // pred_check
      _
    $region27: #{tpu_custom_call.1} parent=1 // pred_check_branch
      %35 = sbr.rel (0) target = $region29
    $region28: #{tpu_custom_call.1} parent=1 // pred_region
      _
    $region29: #{tpu_custom_call.1} parent=1 // pred_fallthru
      _
    // Predicated region
    $region30: #{tpu_custom_call.1} parent=1 // pred_check
      _
    $region31: #{tpu_custom_call.1} parent=1 // pred_check_branch
      %37 = sbr.rel (0) target = $region33
    $region32: #{tpu_custom_call.1} parent=1 // pred_region
      %38 = dma.done [#allocation3], 128
    $region33: #{tpu_custom_call.1} parent=1 // pred_fallthru
      _
    %v39 = vld [vmem:[%s0] sm:$0xff]
    %v40 = vld [vmem:[%s0 + $0x8] sm:$0xff]
    %v41 = vld [vmem:[%s0 + $0x10] sm:$0xff]
    %v42 = vld [vmem:[%s0 + $0x18] sm:$0xff]
    %v43 = vld [vmem:[%s1] sm:$0xff]
    %v44 = vld [vmem:[%s1 + $0x8] sm:$0xff]
    %v45 = vld [vmem:[%s1 + $0x10] sm:$0xff]
    %v46 = vld [vmem:[%s1 + $0x18] sm:$0xff]
    %v47 = vld [vmem:[%s1 + $0x20] sm:$0x1]
    %v48 = vld [vmem:[%s1 + $0x28] sm:$0x1]
    %v49 = vld [vmem:[%s1 + $0x30] sm:$0x1]
    %v50 = vld [vmem:[%s1 + $0x38] sm:$0x1]
    %v51 = vld [vmem:[%s3] sm:$0xff]
    %v52 = vld [vmem:[%s3 + $0x8] sm:$0xff]
    %v53 = vld [vmem:[%s3 + $0x10] sm:$0xff]
    %v54 = vld [vmem:[%s3 + $0x18] sm:$0xff]
    %v55 = vld [vmem:[%s4] sm:$0xff]
    %v56 = vld [vmem:[%s4 + $0x8] sm:$0xff]
    %v57 = vld [vmem:[%s4 + $0x10] sm:$0xff]
    %v58 = vld [vmem:[%s4 + $0x18] sm:$0xff]
    %v59 = vld [vmem:[%s5] sm:$0xff]
    %v60 = vld [vmem:[%s5 + $0x8] sm:$0xff]
    %v61 = vld [vmem:[%s5 + $0x10] sm:$0xff]
    %v62 = vld [vmem:[%s5 + $0x18] sm:$0xff]
    %v63 = vld [vmem:[%s6] sm:$0xff]
    %v64 = vld [vmem:[%s6 + $0x8] sm:$0xff]
    %v65 = vmax.f32 %v39, 0.0
    %v66 = vmax.f32 %v40, 0.0
    %v67 = vmax.f32 %v41, 0.0
    %v68 = vmax.f32 %v42, 0.0
    %v69 = vld [vmem:[#allocation2] sm:$0xff]
    %71 = vset.pattern.permute.xlu0 4
    %72 = vperm.xlu0 %71, %v69
    %v73 = vpop.permute.xlu0 %72
    %v75 = vmul.f32 %v65, %v73
    %v76 = vmul.f32 %v66, %v73
    %v77 = vmul.f32 %v67, %v73
    %v78 = vmul.f32 %v68, %v73
    %79 = vrot.lane.b32.xlu0 %v65, 17
    %v80 = vpop.permute.xlu0 %79
    %81 = vrot.lane.b32.xlu0 %v66, 17
    %v82 = vpop.permute.xlu0 %81
    %83 = vrot.lane.b32.xlu0 %v67, 17
    %v84 = vpop.permute.xlu0 %83
    %85 = vrot.lane.b32.xlu0 %v68, 17
    %v86 = vpop.permute.xlu0 %85
    %v87 = vlaneseq
    %v88 = vand.u32 %v87, 127
    %vm89 = vcmp.lt.s32.totalorder %v88, 17
    %v90 = vsel %vm89, %v84, %v86
    %v91 = vsel %vm89, %v82, %v84
    %v92 = vsel %vm89, %v80, %v82
    %v93 = vsel %vm89, %v86, %v80
    %v94 = vlaneseq
    %v95 = vshrl.u32 %v94, 7
    %v96 = vsub.s32 0, %v95
    %v97 = vrot.slane %v43, %v96
    %v98 = vlaneseq
    %v99 = vshrl.u32 %v98, 7
    %v100 = vsub.s32 0, %v99
    %v101 = vrot.slane %v44, %v100
    %v102 = vlaneseq
    %v103 = vshrl.u32 %v102, 7
    %v104 = vsub.s32 0, %v103
    %v105 = vrot.slane %v45, %v104
    %v106 = vlaneseq
    %v107 = vshrl.u32 %v106, 7
    %v108 = vsub.s32 0, %v107
    %v109 = vrot.slane %v46, %v108
    %v110 = vmul.f32 %v93, %v97
    %v111 = vmul.f32 %v92, %v101
    %v112 = vmul.f32 %v91, %v105
    %v113 = vmul.f32 %v90, %v109
    %114 = vset.pattern.permute.xlu0 0
    %115 = vperm.xlu0 %114, %v69
    %v116 = vpop.permute.xlu0 %115
    %v118 = vmul.f32 %v110, %v116
    %v119 = vmul.f32 %v111, %v116
    %v120 = vmul.f32 %v112, %v116
    %v121 = vmul.f32 %v113, %v116
    %122 = vrot.lane.b32.xlu0 %v65, 16
    %v123 = vpop.permute.xlu0 %122
    %124 = vrot.lane.b32.xlu0 %v66, 16
    %v125 = vpop.permute.xlu0 %124
    %126 = vrot.lane.b32.xlu0 %v67, 16
    %v127 = vpop.permute.xlu0 %126
    %128 = vrot.lane.b32.xlu0 %v68, 16
    %v129 = vpop.permute.xlu0 %128
    %vm130 = vcmp.lt.s32.totalorder %v88, 16
    %v131 = vsel %vm130, %v127, %v129
    %v132 = vsel %vm130, %v125, %v127
    %v133 = vsel %vm130, %v123, %v125
    %v134 = vsel %vm130, %v129, %v123
    %v135 = vlaneseq
    %v136 = vshrl.u32 %v135, 7
    %v137 = vsub.s32 1, %v136
    %v138 = vrot.slane %v43, %v137
    %v139 = vlaneseq
    %v140 = vshrl.u32 %v139, 7
    %v141 = vsub.s32 1, %v140
    %v142 = vrot.slane %v44, %v141
    %v143 = vlaneseq
    %v144 = vshrl.u32 %v143, 7
    %v145 = vsub.s32 1, %v144
    %v146 = vrot.slane %v45, %v145
    %v147 = vlaneseq
    %v148 = vshrl.u32 %v147, 7
    %v149 = vsub.s32 1, %v148
    %v150 = vrot.slane %v46, %v149
    %v151 = vmul.f32 %v134, %v138
    %v152 = vmul.f32 %v133, %v142
    %v153 = vmul.f32 %v132, %v146
    %v154 = vmul.f32 %v131, %v150
    %155 = vset.pattern.permute.xlu0 1
    %156 = vperm.xlu0 %155, %v69
    %v157 = vpop.permute.xlu0 %156
    %v159 = vmul.f32 %v151, %v157
    %v160 = vmul.f32 %v152, %v157
    %v161 = vmul.f32 %v153, %v157
    %v162 = vmul.f32 %v154, %v157
    %163 = vrot.lane.b32.xlu0 %v65, 15
    %v164 = vpop.permute.xlu0 %163
    %165 = vrot.lane.b32.xlu0 %v66, 15
    %v166 = vpop.permute.xlu0 %165
    %167 = vrot.lane.b32.xlu0 %v67, 15
    %v168 = vpop.permute.xlu0 %167
    %169 = vrot.lane.b32.xlu0 %v68, 15
    %v170 = vpop.permute.xlu0 %169
    %vm171 = vcmp.lt.s32.totalorder %v88, 15
    %v172 = vsel %vm171, %v168, %v170
    %v173 = vsel %vm171, %v166, %v168
    %v174 = vsel %vm171, %v164, %v166
    %v175 = vsel %vm171, %v170, %v164
    %v176 = vlaneseq
    %v177 = vshrl.u32 %v176, 7
    %v178 = vsub.s32 2, %v177
    %v179 = vrot.slane %v43, %v178
    %v180 = vlaneseq
    %v181 = vshrl.u32 %v180, 7
    %v182 = vsub.s32 2, %v181
    %v183 = vrot.slane %v44, %v182
    %v184 = vlaneseq
    %v185 = vshrl.u32 %v184, 7
    %v186 = vsub.s32 2, %v185
    %v187 = vrot.slane %v45, %v186
    %v188 = vlaneseq
    %v189 = vshrl.u32 %v188, 7
    %v190 = vsub.s32 2, %v189
    %v191 = vrot.slane %v46, %v190
    %v192 = vmul.f32 %v175, %v179
    %v193 = vmul.f32 %v174, %v183
    %v194 = vmul.f32 %v173, %v187
    %v195 = vmul.f32 %v172, %v191
    %196 = vset.pattern.permute.xlu0 2
    %197 = vperm.xlu0 %196, %v69
    %v198 = vpop.permute.xlu0 %197
    %v200 = vmul.f32 %v192, %v198
    %v201 = vmul.f32 %v193, %v198
    %v202 = vmul.f32 %v194, %v198
    %v203 = vmul.f32 %v195, %v198
    %204 = vrot.lane.b32.xlu0 %v65, 1
    %v205 = vpop.permute.xlu0 %204
    %206 = vrot.lane.b32.xlu0 %v66, 1
    %v207 = vpop.permute.xlu0 %206
    %208 = vrot.lane.b32.xlu0 %v67, 1
    %v209 = vpop.permute.xlu0 %208
    %210 = vrot.lane.b32.xlu0 %v68, 1
    %v211 = vpop.permute.xlu0 %210
    %vm212 = vcmp.lt.s32.totalorder %v88, 1
    %v213 = vsel %vm212, %v209, %v211
    %v214 = vsel %vm212, %v207, %v209
    %v215 = vsel %vm212, %v205, %v207
    %v216 = vsel %vm212, %v211, %v205
    %v217 = vlaneseq
    %v218 = vshrl.u32 %v217, 7
    %v219 = vsub.s32 3, %v218
    %v220 = vrot.slane %v43, %v219
    %v221 = vlaneseq
    %v222 = vshrl.u32 %v221, 7
    %v223 = vsub.s32 3, %v222
    %v224 = vrot.slane %v44, %v223
    %v225 = vlaneseq
    %v226 = vshrl.u32 %v225, 7
    %v227 = vsub.s32 3, %v226
    %v228 = vrot.slane %v45, %v227
    %v229 = vlaneseq
    %v230 = vshrl.u32 %v229, 7
    %v231 = vsub.s32 3, %v230
    %v232 = vrot.slane %v46, %v231
    %v233 = vmul.f32 %v216, %v220
    %v234 = vmul.f32 %v215, %v224
    %v235 = vmul.f32 %v214, %v228
    %v236 = vmul.f32 %v213, %v232
    %237 = vset.pattern.permute.xlu0 3
    %238 = vperm.xlu0 %237, %v69
    %v239 = vpop.permute.xlu0 %238
    %v241 = vmul.f32 %v233, %v239
    %v242 = vmul.f32 %v234, %v239
    %v243 = vmul.f32 %v235, %v239
    %v244 = vmul.f32 %v236, %v239
    %245 = vrot.lane.b32.xlu0 %v65, 127
    %v246 = vpop.permute.xlu0 %245
    %247 = vrot.lane.b32.xlu0 %v66, 127
    %v248 = vpop.permute.xlu0 %247
    %249 = vrot.lane.b32.xlu0 %v67, 127
    %v250 = vpop.permute.xlu0 %249
    %251 = vrot.lane.b32.xlu0 %v68, 127
    %v252 = vpop.permute.xlu0 %251
    %vm253 = vcmp.lt.s32.totalorder %v88, 127
    %v254 = vsel %vm253, %v250, %v252
    %v255 = vsel %vm253, %v248, %v250
    %v256 = vsel %vm253, %v246, %v248
    %v257 = vsel %vm253, %v252, %v246
    %v258 = vlaneseq
    %v259 = vshrl.u32 %v258, 7
    %v260 = vsub.s32 5, %v259
    %v261 = vrot.slane %v43, %v260
    %v262 = vlaneseq
    %v263 = vshrl.u32 %v262, 7
    %v264 = vsub.s32 5, %v263
    %v265 = vrot.slane %v44, %v264
    %v266 = vlaneseq
    %v267 = vshrl.u32 %v266, 7
    %v268 = vsub.s32 5, %v267
    %v269 = vrot.slane %v45, %v268
    %v270 = vlaneseq
    %v271 = vshrl.u32 %v270, 7
    %v272 = vsub.s32 5, %v271
    %v273 = vrot.slane %v46, %v272
    %v274 = vmul.f32 %v256, %v261
    %v275 = vmul.f32 %v255, %v265
    %v276 = vmul.f32 %v254, %v269
    %v277 = vmul.f32 %v257, %v273
    %278 = vset.pattern.permute.xlu0 5
    %279 = vperm.xlu0 %278, %v69
    %v280 = vpop.permute.xlu0 %279
    %v282 = vmul.f32 %v274, %v280
    %v283 = vmul.f32 %v275, %v280
    %v284 = vmul.f32 %v276, %v280
    %v285 = vmul.f32 %v277, %v280
    %286 = vrot.lane.b32.xlu0 %v65, 113
    %v287 = vpop.permute.xlu0 %286
    %288 = vrot.lane.b32.xlu0 %v66, 113
    %v289 = vpop.permute.xlu0 %288
    %290 = vrot.lane.b32.xlu0 %v67, 113
    %v291 = vpop.permute.xlu0 %290
    %292 = vrot.lane.b32.xlu0 %v68, 113
    %v293 = vpop.permute.xlu0 %292
    %vm294 = vcmp.lt.s32.totalorder %v88, 113
    %v295 = vsel %vm294, %v291, %v293
    %v296 = vsel %vm294, %v289, %v291
    %v297 = vsel %vm294, %v287, %v289
    %v298 = vsel %vm294, %v293, %v287
    %v299 = vlaneseq
    %v300 = vshrl.u32 %v299, 7
    %v301 = vsub.s32 6, %v300
    %v302 = vrot.slane %v43, %v301
    %v303 = vlaneseq
    %v304 = vshrl.u32 %v303, 7
    %v305 = vsub.s32 6, %v304
    %v306 = vrot.slane %v44, %v305
    %v307 = vlaneseq
    %v308 = vshrl.u32 %v307, 7
    %v309 = vsub.s32 6, %v308
    %v310 = vrot.slane %v45, %v309
    %v311 = vlaneseq
    %v312 = vshrl.u32 %v311, 7
    %v313 = vsub.s32 6, %v312
    %v314 = vrot.slane %v46, %v313
    %v315 = vmul.f32 %v297, %v302
    %v316 = vmul.f32 %v296, %v306
    %v317 = vmul.f32 %v295, %v310
    %v318 = vmul.f32 %v298, %v314
    %319 = vset.pattern.permute.xlu0 6
    %320 = vperm.xlu0 %319, %v69
    %v321 = vpop.permute.xlu0 %320
    %v323 = vmul.f32 %v315, %v321
    %v324 = vmul.f32 %v316, %v321
    %v325 = vmul.f32 %v317, %v321
    %v326 = vmul.f32 %v318, %v321
    %327 = vrot.lane.b32.xlu0 %v65, 112
    %v328 = vpop.permute.xlu0 %327
    %329 = vrot.lane.b32.xlu0 %v66, 112
    %v330 = vpop.permute.xlu0 %329
    %331 = vrot.lane.b32.xlu0 %v67, 112
    %v332 = vpop.permute.xlu0 %331
    %333 = vrot.lane.b32.xlu0 %v68, 112
    %v334 = vpop.permute.xlu0 %333
    %vm335 = vcmp.lt.s32.totalorder %v88, 112
    %v336 = vsel %vm335, %v332, %v334
    %v337 = vsel %vm335, %v330, %v332
    %v338 = vsel %vm335, %v328, %v330
    %v339 = vsel %vm335, %v334, %v328
    %v340 = vlaneseq
    %v341 = vshrl.u32 %v340, 7
    %v342 = vsub.s32 7, %v341
    %v343 = vrot.slane %v43, %v342
    %v344 = vlaneseq
    %v345 = vshrl.u32 %v344, 7
    %v346 = vsub.s32 7, %v345
    %v347 = vrot.slane %v44, %v346
    %v348 = vlaneseq
    %v349 = vshrl.u32 %v348, 7
    %v350 = vsub.s32 7, %v349
    %v351 = vrot.slane %v45, %v350
    %v352 = vlaneseq
    %v353 = vshrl.u32 %v352, 7
    %v354 = vsub.s32 7, %v353
    %v355 = vrot.slane %v46, %v354
    %v356 = vmul.f32 %v338, %v343
    %v357 = vmul.f32 %v337, %v347
    %v358 = vmul.f32 %v336, %v351
    %v359 = vmul.f32 %v339, %v355
    %360 = vset.pattern.permute.xlu0 7
    %361 = vperm.xlu0 %360, %v69
    %v362 = vpop.permute.xlu0 %361
    %v364 = vmul.f32 %v356, %v362
    %v365 = vmul.f32 %v357, %v362
    %v366 = vmul.f32 %v358, %v362
    %v367 = vmul.f32 %v359, %v362
    %368 = vrot.lane.b32.xlu0 %v65, 111
    %v369 = vpop.permute.xlu0 %368
    %370 = vrot.lane.b32.xlu0 %v66, 111
    %v371 = vpop.permute.xlu0 %370
    %372 = vrot.lane.b32.xlu0 %v67, 111
    %v373 = vpop.permute.xlu0 %372
    %374 = vrot.lane.b32.xlu0 %v68, 111
    %v375 = vpop.permute.xlu0 %374
    %vm376 = vcmp.lt.s32.totalorder %v88, 111
    %v377 = vsel %vm376, %v373, %v375
    %v378 = vsel %vm376, %v371, %v373
    %v379 = vsel %vm376, %v369, %v371
    %v380 = vsel %vm376, %v375, %v369
    %v381 = vlaneseq
    %v382 = vshrl.u32 %v381, 7
    %v383 = vsub.s32 0, %v382
    %v384 = vrot.slane %v47, %v383
    %v385 = vlaneseq
    %v386 = vshrl.u32 %v385, 7
    %v387 = vsub.s32 0, %v386
    %v388 = vrot.slane %v48, %v387
    %v389 = vlaneseq
    %v390 = vshrl.u32 %v389, 7
    %v391 = vsub.s32 0, %v390
    %v392 = vrot.slane %v49, %v391
    %v393 = vlaneseq
    %v394 = vshrl.u32 %v393, 7
    %v395 = vsub.s32 0, %v394
    %v396 = vrot.slane %v50, %v395
    %v397 = vmul.f32 %v379, %v384
    %v398 = vmul.f32 %v378, %v388
    %v399 = vmul.f32 %v377, %v392
    %v400 = vmul.f32 %v380, %v396
    %401 = vset.pattern.permute.xlu0 8
    %402 = vperm.xlu0 %401, %v69
    %v403 = vpop.permute.xlu0 %402
    %v405 = vmul.f32 %v397, %v403
    %v406 = vmul.f32 %v398, %v403
    %v407 = vmul.f32 %v399, %v403
    %v408 = vmul.f32 %v400, %v403
    %v409 = vadd.f32 %v75, %v118
    %v410 = vadd.f32 %v76, %v119
    %v411 = vadd.f32 %v77, %v120
    %v412 = vadd.f32 %v78, %v121
    %v413 = vadd.f32 %v159, %v200
    %v414 = vadd.f32 %v160, %v201
    %v415 = vadd.f32 %v161, %v202
    %v416 = vadd.f32 %v162, %v203
    %v417 = vadd.f32 %v241, %v282
    %v418 = vadd.f32 %v242, %v283
    %v419 = vadd.f32 %v243, %v284
    %v420 = vadd.f32 %v244, %v285
    %v421 = vadd.f32 %v323, %v364
    %v422 = vadd.f32 %v324, %v365
    %v423 = vadd.f32 %v325, %v366
    %v424 = vadd.f32 %v326, %v367
    %v425 = vadd.f32 %v409, %v413
    %v426 = vadd.f32 %v410, %v414
    %v427 = vadd.f32 %v411, %v415
    %v428 = vadd.f32 %v412, %v416
    %v429 = vadd.f32 %v417, %v421
    %v430 = vadd.f32 %v418, %v422
    %v431 = vadd.f32 %v419, %v423
    %v432 = vadd.f32 %v420, %v424
    %v433 = vadd.f32 %v425, %v429
    %v434 = vadd.f32 %v426, %v430
    %v435 = vadd.f32 %v427, %v431
    %v436 = vadd.f32 %v428, %v432
    %v437 = vadd.f32 %v433, %v405
    %v438 = vadd.f32 %v434, %v406
    %v439 = vadd.f32 %v435, %v407
    %v440 = vadd.f32 %v436, %v408
    %442 = vset.pattern.permute.xlu0 0
    %443 = vperm.xlu0 %442, %v63
    %v444 = vpop.permute.xlu0 %443
    %447 = vset.pattern.permute.xlu0 0
    %448 = vperm.xlu0 %447, %v64
    %v449 = vpop.permute.xlu0 %448
    %vm451 = vcmask 64512
    %v453 = vsel %vm451, %v55, 0
    %v456 = vsel %vm451, %v56, 0
    %458 = vmatprep.subr.mxu0 %v438
    %459 = vmatpush1.msra.mxu0 %v437
    %460 = vmatprep.subr.mxu0 0.0
    %461 = vmatpush1.msra.mxu0 0.0
    %462 = vmatprep.subr.mxu0 0.0
    %463 = vmatpush1.msra.mxu0 0.0
    %464 = vmatprep.subr.mxu0 0.0
    %465 = vmatpush1.msra.mxu0 0.0
    %466 = vmatprep.subr.mxu0 0.0
    %467 = vmatpush1.msra.mxu0 0.0
    %468 = vmatprep.subr.mxu0 0.0
    %469 = vmatpush1.msra.mxu0 0.0
    %470 = vmatprep.subr.mxu0 0.0
    %471 = vmatpush1.msra.mxu0 0.0
    %472 = vmatprep.subr.mxu0 0.0
    %473 = vmatpush1.msra.mxu0 0.0
    %474 = vmatprep.subr.mxu0 0.0
    %475 = vmatpush1.msra.mxu0 0.0
    %476 = vmatprep.subr.mxu0 0.0
    %477 = vmatpush1.msra.mxu0 0.0
    %478 = vmatprep.subr.mxu0 0.0
    %479 = vmatpush1.msra.mxu0 0.0
    %480 = vmatprep.subr.mxu0 0.0
    %481 = vmatpush1.msra.mxu0 0.0
    %482 = vmatprep.subr.mxu0 0.0
    %483 = vmatpush1.msra.mxu0 0.0
    %484 = vmatprep.subr.mxu0 0.0
    %485 = vmatpush1.msra.mxu0 0.0
    %486 = vmatprep.subr.mxu0 0.0
    %487 = vmatpush1.msra.mxu0 0.0
    %488 = vmatprep.subr.mxu0 0.0
    %489 = vmatpush1.msra.mxu0 0.0
    %490 = vmatprep.subr.mxu0 0.0
    %491 = vmatpush1.msra.mxu0 0.0
    %492 = vmatprep.subr.mxu0 0.0
    %493 = vmatpush1.msra.mxu0 0.0
    %494 = vmatprep.subr.mxu0 0.0
    %495 = vmatpush1.msra.mxu0 0.0
    %496 = vmatprep.subr.mxu0 0.0
    %497 = vmatpush1.msra.mxu0 0.0
    %498 = vmatprep.subr.mxu0 0.0
    %499 = vmatpush1.msra.mxu0 0.0
    %500 = vmatprep.subr.mxu0 0.0
    %501 = vmatpush1.msra.mxu0 0.0
    %502 = vmatprep.subr.mxu0 0.0
    %503 = vmatpush1.msra.mxu0 0.0
    %504 = vmatprep.subr.mxu0 0.0
    %505 = vmatpush1.msra.mxu0 0.0
    %506 = vmatprep.subr.mxu0 0.0
    %507 = vmatpush1.msra.mxu0 0.0
    %508 = vmatprep.subr.mxu0 0.0
    %509 = vmatpush1.msra.mxu0 0.0
    %510 = vmatprep.subr.mxu0 0.0
    %511 = vmatpush1.msra.mxu0 0.0
    %512 = vmatprep.subr.mxu0 0.0
    %513 = vmatpush1.msra.mxu0 0.0
    %514 = vmatprep.subr.mxu0 0.0
    %515 = vmatpush1.msra.mxu0 0.0
    %516 = vmatprep.subr.mxu0 0.0
    %517 = vmatpush1.msra.mxu0 0.0
    %518 = vmatprep.subr.mxu0 0.0
    %519 = vmatpush1.msra.mxu0 0.0
    %520 = vmatprep.subr.mxu0 0.0
    %521 = vmatpush1.msra.mxu0 0.0
    %522 = vmatprep.mubr.f32.mxu0 0.0
    %523 = vmatmul.mubr.f32.gmra.mrb[0].mxu0 %v453
    %v524 = vpop.f32.mrb[0].mxu0
    %v525 = vadd.f32 %v444, %v524
    %v526 = vpop.f32.mrb[0].mxu0
    %v527 = vadd.f32 %v444, %v526
    %528 = vmatprep.mubr.f32.mxu0 0.0
    %529 = vmatmul.mubr.f32.gmra.mrb[0].mxu0 %v456
    %v530 = vpop.f32.mrb[0].mxu0
    %v531 = vadd.f32 %v449, %v530
    %v532 = vpop.f32.mrb[0].mxu0
    %v533 = vadd.f32 %v449, %v532
    %534 = vdwg.mxu0
    %535 = vmatprep.subr.mxu0 %v440
    %536 = vmatpush1.msra.mxu0 %v439
    %537 = vmatprep.subr.mxu0 0.0
    %538 = vmatpush1.msra.mxu0 0.0
    %539 = vmatprep.subr.mxu0 0.0
    %540 = vmatpush1.msra.mxu0 0.0
    %541 = vmatprep.subr.mxu0 0.0
    %542 = vmatpush1.msra.mxu0 0.0
    %543 = vmatprep.subr.mxu0 0.0
    %544 = vmatpush1.msra.mxu0 0.0
    %545 = vmatprep.subr.mxu0 0.0
    %546 = vmatpush1.msra.mxu0 0.0
    %547 = vmatprep.subr.mxu0 0.0
    %548 = vmatpush1.msra.mxu0 0.0
    %549 = vmatprep.subr.mxu0 0.0
    %550 = vmatpush1.msra.mxu0 0.0
    %551 = vmatprep.subr.mxu0 0.0
    %552 = vmatpush1.msra.mxu0 0.0
    %553 = vmatprep.subr.mxu0 0.0
    %554 = vmatpush1.msra.mxu0 0.0
    %555 = vmatprep.subr.mxu0 0.0
    %556 = vmatpush1.msra.mxu0 0.0
    %557 = vmatprep.subr.mxu0 0.0
    %558 = vmatpush1.msra.mxu0 0.0
    %559 = vmatprep.subr.mxu0 0.0
    %560 = vmatpush1.msra.mxu0 0.0
    %561 = vmatprep.subr.mxu0 0.0
    %562 = vmatpush1.msra.mxu0 0.0
    %563 = vmatprep.subr.mxu0 0.0
    %564 = vmatpush1.msra.mxu0 0.0
    %565 = vmatprep.subr.mxu0 0.0
    %566 = vmatpush1.msra.mxu0 0.0
    %567 = vmatprep.subr.mxu0 0.0
    %568 = vmatpush1.msra.mxu0 0.0
    %569 = vmatprep.subr.mxu0 0.0
    %570 = vmatpush1.msra.mxu0 0.0
    %571 = vmatprep.subr.mxu0 0.0
    %572 = vmatpush1.msra.mxu0 0.0
    %573 = vmatprep.subr.mxu0 0.0
    %574 = vmatpush1.msra.mxu0 0.0
    %575 = vmatprep.subr.mxu0 0.0
    %576 = vmatpush1.msra.mxu0 0.0
    %577 = vmatprep.subr.mxu0 0.0
    %578 = vmatpush1.msra.mxu0 0.0
    %579 = vmatprep.subr.mxu0 0.0
    %580 = vmatpush1.msra.mxu0 0.0
    %581 = vmatprep.subr.mxu0 0.0
    %582 = vmatpush1.msra.mxu0 0.0
    %583 = vmatprep.subr.mxu0 0.0
    %584 = vmatpush1.msra.mxu0 0.0
    %585 = vmatprep.subr.mxu0 0.0
    %586 = vmatpush1.msra.mxu0 0.0
    %587 = vmatprep.subr.mxu0 0.0
    %588 = vmatpush1.msra.mxu0 0.0
    %589 = vmatprep.subr.mxu0 0.0
    %590 = vmatpush1.msra.mxu0 0.0
    %591 = vmatprep.subr.mxu0 0.0
    %592 = vmatpush1.msra.mxu0 0.0
    %593 = vmatprep.subr.mxu0 0.0
    %594 = vmatpush1.msra.mxu0 0.0
    %595 = vmatprep.subr.mxu0 0.0
    %596 = vmatpush1.msra.mxu0 0.0
    %597 = vmatprep.subr.mxu0 0.0
    %598 = vmatpush1.msra.mxu0 0.0
    %599 = vmatprep.mubr.f32.mxu0 0.0
    %600 = vmatmul.mubr.f32.gmra.mrb[0].mxu0 %v453
    %v601 = vpop.f32.mrb[0].mxu0
    %v602 = vadd.f32 %v444, %v601
    %v603 = vpop.f32.mrb[0].mxu0
    %v604 = vadd.f32 %v444, %v603
    %605 = vmatprep.mubr.f32.mxu0 0.0
    %606 = vmatmul.mubr.f32.gmra.mrb[0].mxu0 %v456
    %v607 = vpop.f32.mrb[0].mxu0
    %v608 = vadd.f32 %v449, %v607
    %v609 = vpop.f32.mrb[0].mxu0
    %v610 = vadd.f32 %v449, %v609
    %611 = vdwg.mxu0
    %v612 = vmax.f32 %v525, 0.0
    %v613 = vmax.f32 %v527, 0.0
    %v614 = vmax.f32 %v602, 0.0
    %v615 = vmax.f32 %v604, 0.0
    %v616 = vmax.f32 %v531, 0.0
    %v617 = vmax.f32 %v533, 0.0
    %v618 = vmax.f32 %v608, 0.0
    %v619 = vmax.f32 %v610, 0.0
    %621 = vset.pattern.permute.xlu0 4
    %622 = vperm.xlu0 %621, %v51
    %v623 = vpop.permute.xlu0 %622
    %626 = vset.pattern.permute.xlu0 4
    %627 = vperm.xlu0 %626, %v52
    %v628 = vpop.permute.xlu0 %627
    %v630 = vmul.f32 %v612, %v623
    %v631 = vmul.f32 %v613, %v623
    %v632 = vmul.f32 %v614, %v623
    %v633 = vmul.f32 %v615, %v623
    %v634 = vmul.f32 %v616, %v628
    %v635 = vmul.f32 %v617, %v628
    %v636 = vmul.f32 %v618, %v628
    %v637 = vmul.f32 %v619, %v628
    %638 = vrot.lane.b32.xlu0 %v612, 17
    %v639 = vpop.permute.xlu0 %638
    %640 = vrot.lane.b32.xlu0 %v616, 17
    %v641 = vpop.permute.xlu0 %640
    %642 = vrot.lane.b32.xlu0 %v613, 17
    %v643 = vpop.permute.xlu0 %642
    %644 = vrot.lane.b32.xlu0 %v617, 17
    %v645 = vpop.permute.xlu0 %644
    %646 = vrot.lane.b32.xlu0 %v614, 17
    %v647 = vpop.permute.xlu0 %646
    %648 = vrot.lane.b32.xlu0 %v618, 17
    %v649 = vpop.permute.xlu0 %648
    %650 = vrot.lane.b32.xlu0 %v615, 17
    %v651 = vpop.permute.xlu0 %650
    %652 = vrot.lane.b32.xlu0 %v619, 17
    %v653 = vpop.permute.xlu0 %652
    %v654 = vsel %vm89, %v647, %v651
    %v655 = vsel %vm89, %v649, %v653
    %v656 = vsel %vm89, %v643, %v647
    %v657 = vsel %vm89, %v645, %v649
    %v658 = vsel %vm89, %v639, %v643
    %v659 = vsel %vm89, %v641, %v645
    %v660 = vsel %vm89, %v651, %v639
    %v661 = vsel %vm89, %v653, %v641
    %v662 = vmul.f32 %v660, %v97
    %v663 = vmul.f32 %v658, %v101
    %v664 = vmul.f32 %v656, %v105
    %v665 = vmul.f32 %v654, %v109
    %v666 = vmul.f32 %v661, %v97
    %v667 = vmul.f32 %v659, %v101
    %v668 = vmul.f32 %v657, %v105
    %v669 = vmul.f32 %v655, %v109
    %670 = vset.pattern.permute.xlu0 0
    %671 = vperm.xlu0 %670, %v51
    %v672 = vpop.permute.xlu0 %671
    %674 = vset.pattern.permute.xlu0 0
    %675 = vperm.xlu0 %674, %v52
    %v676 = vpop.permute.xlu0 %675
    %v678 = vmul.f32 %v662, %v672
    %v679 = vmul.f32 %v663, %v672
    %v680 = vmul.f32 %v664, %v672
    %v681 = vmul.f32 %v665, %v672
    %v682 = vmul.f32 %v666, %v676
    %v683 = vmul.f32 %v667, %v676
    %v684 = vmul.f32 %v668, %v676
    %v685 = vmul.f32 %v669, %v676
    %686 = vrot.lane.b32.xlu0 %v612, 16
    %v687 = vpop.permute.xlu0 %686
    %688 = vrot.lane.b32.xlu0 %v616, 16
    %v689 = vpop.permute.xlu0 %688
    %690 = vrot.lane.b32.xlu0 %v613, 16
    %v691 = vpop.permute.xlu0 %690
    %692 = vrot.lane.b32.xlu0 %v617, 16
    %v693 = vpop.permute.xlu0 %692
    %694 = vrot.lane.b32.xlu0 %v614, 16
    %v695 = vpop.permute.xlu0 %694
    %696 = vrot.lane.b32.xlu0 %v618, 16
    %v697 = vpop.permute.xlu0 %696
    %698 = vrot.lane.b32.xlu0 %v615, 16
    %v699 = vpop.permute.xlu0 %698
    %700 = vrot.lane.b32.xlu0 %v619, 16
    %v701 = vpop.permute.xlu0 %700
    %v702 = vsel %vm130, %v695, %v699
    %v703 = vsel %vm130, %v697, %v701
    %v704 = vsel %vm130, %v691, %v695
    %v705 = vsel %vm130, %v693, %v697
    %v706 = vsel %vm130, %v687, %v691
    %v707 = vsel %vm130, %v689, %v693
    %v708 = vsel %vm130, %v699, %v687
    %v709 = vsel %vm130, %v701, %v689
    %v710 = vmul.f32 %v708, %v138
    %v711 = vmul.f32 %v706, %v142
    %v712 = vmul.f32 %v704, %v146
    %v713 = vmul.f32 %v702, %v150
    %v714 = vmul.f32 %v709, %v138
    %v715 = vmul.f32 %v707, %v142
    %v716 = vmul.f32 %v705, %v146
    %v717 = vmul.f32 %v703, %v150
    %718 = vset.pattern.permute.xlu0 1
    %719 = vperm.xlu0 %718, %v51
    %v720 = vpop.permute.xlu0 %719
    %722 = vset.pattern.permute.xlu0 1
    %723 = vperm.xlu0 %722, %v52
    %v724 = vpop.permute.xlu0 %723
    %v726 = vmul.f32 %v710, %v720
    %v727 = vmul.f32 %v711, %v720
    %v728 = vmul.f32 %v712, %v720
    %v729 = vmul.f32 %v713, %v720
    %v730 = vmul.f32 %v714, %v724
    %v731 = vmul.f32 %v715, %v724
    %v732 = vmul.f32 %v716, %v724
    %v733 = vmul.f32 %v717, %v724
    %734 = vrot.lane.b32.xlu0 %v612, 15
    %v735 = vpop.permute.xlu0 %734
    %736 = vrot.lane.b32.xlu0 %v616, 15
    %v737 = vpop.permute.xlu0 %736
    %738 = vrot.lane.b32.xlu0 %v613, 15
    %v739 = vpop.permute.xlu0 %738
    %740 = vrot.lane.b32.xlu0 %v617, 15
    %v741 = vpop.permute.xlu0 %740
    %742 = vrot.lane.b32.xlu0 %v614, 15
    %v743 = vpop.permute.xlu0 %742
    %744 = vrot.lane.b32.xlu0 %v618, 15
    %v745 = vpop.permute.xlu0 %744
    %746 = vrot.lane.b32.xlu0 %v615, 15
    %v747 = vpop.permute.xlu0 %746
    %748 = vrot.lane.b32.xlu0 %v619, 15
    %v749 = vpop.permute.xlu0 %748
    %v750 = vsel %vm171, %v743, %v747
    %v751 = vsel %vm171, %v745, %v749
    %v752 = vsel %vm171, %v739, %v743
    %v753 = vsel %vm171, %v741, %v745
    %v754 = vsel %vm171, %v735, %v739
    %v755 = vsel %vm171, %v737, %v741
    %v756 = vsel %vm171, %v747, %v735
    %v757 = vsel %vm171, %v749, %v737
    %v758 = vmul.f32 %v756, %v179
    %v759 = vmul.f32 %v754, %v183
    %v760 = vmul.f32 %v752, %v187
    %v761 = vmul.f32 %v750, %v191
    %v762 = vmul.f32 %v757, %v179
    %v763 = vmul.f32 %v755, %v183
    %v764 = vmul.f32 %v753, %v187
    %v765 = vmul.f32 %v751, %v191
    %766 = vset.pattern.permute.xlu0 2
    %767 = vperm.xlu0 %766, %v51
    %v768 = vpop.permute.xlu0 %767
    %770 = vset.pattern.permute.xlu0 2
    %771 = vperm.xlu0 %770, %v52
    %v772 = vpop.permute.xlu0 %771
    %v774 = vmul.f32 %v758, %v768
    %v775 = vmul.f32 %v759, %v768
    %v776 = vmul.f32 %v760, %v768
    %v777 = vmul.f32 %v761, %v768
    %v778 = vmul.f32 %v762, %v772
    %v779 = vmul.f32 %v763, %v772
    %v780 = vmul.f32 %v764, %v772
    %v781 = vmul.f32 %v765, %v772
    %782 = vrot.lane.b32.xlu0 %v612, 1
    %v783 = vpop.permute.xlu0 %782
    %784 = vrot.lane.b32.xlu0 %v616, 1
    %v785 = vpop.permute.xlu0 %784
    %786 = vrot.lane.b32.xlu0 %v613, 1
    %v787 = vpop.permute.xlu0 %786
    %788 = vrot.lane.b32.xlu0 %v617, 1
    %v789 = vpop.permute.xlu0 %788
    %790 = vrot.lane.b32.xlu0 %v614, 1
    %v791 = vpop.permute.xlu0 %790
    %792 = vrot.lane.b32.xlu0 %v618, 1
    %v793 = vpop.permute.xlu0 %792
    %794 = vrot.lane.b32.xlu0 %v615, 1
    %v795 = vpop.permute.xlu0 %794
    %796 = vrot.lane.b32.xlu0 %v619, 1
    %v797 = vpop.permute.xlu0 %796
    %v798 = vsel %vm212, %v791, %v795
    %v799 = vsel %vm212, %v793, %v797
    %v800 = vsel %vm212, %v787, %v791
    %v801 = vsel %vm212, %v789, %v793
    %v802 = vsel %vm212, %v783, %v787
    %v803 = vsel %vm212, %v785, %v789
    %v804 = vsel %vm212, %v795, %v783
    %v805 = vsel %vm212, %v797, %v785
    %v806 = vmul.f32 %v804, %v220
    %v807 = vmul.f32 %v802, %v224
    %v808 = vmul.f32 %v800, %v228
    %v809 = vmul.f32 %v798, %v232
    %v810 = vmul.f32 %v805, %v220
    %v811 = vmul.f32 %v803, %v224
    %v812 = vmul.f32 %v801, %v228
    %v813 = vmul.f32 %v799, %v232
    %814 = vset.pattern.permute.xlu0 3
    %815 = vperm.xlu0 %814, %v51
    %v816 = vpop.permute.xlu0 %815
    %818 = vset.pattern.permute.xlu0 3
    %819 = vperm.xlu0 %818, %v52
    %v820 = vpop.permute.xlu0 %819
    %v822 = vmul.f32 %v806, %v816
    %v823 = vmul.f32 %v807, %v816
    %v824 = vmul.f32 %v808, %v816
    %v825 = vmul.f32 %v809, %v816
    %v826 = vmul.f32 %v810, %v820
    %v827 = vmul.f32 %v811, %v820
    %v828 = vmul.f32 %v812, %v820
    %v829 = vmul.f32 %v813, %v820
    %830 = vrot.lane.b32.xlu0 %v612, 127
    %v831 = vpop.permute.xlu0 %830
    %832 = vrot.lane.b32.xlu0 %v616, 127
    %v833 = vpop.permute.xlu0 %832
    %834 = vrot.lane.b32.xlu0 %v613, 127
    %v835 = vpop.permute.xlu0 %834
    %836 = vrot.lane.b32.xlu0 %v617, 127
    %v837 = vpop.permute.xlu0 %836
    %838 = vrot.lane.b32.xlu0 %v614, 127
    %v839 = vpop.permute.xlu0 %838
    %840 = vrot.lane.b32.xlu0 %v618, 127
    %v841 = vpop.permute.xlu0 %840
    %842 = vrot.lane.b32.xlu0 %v615, 127
    %v843 = vpop.permute.xlu0 %842
    %844 = vrot.lane.b32.xlu0 %v619, 127
    %v845 = vpop.permute.xlu0 %844
    %v846 = vsel %vm253, %v839, %v843
    %v847 = vsel %vm253, %v841, %v845
    %v848 = vsel %vm253, %v835, %v839
    %v849 = vsel %vm253, %v837, %v841
    %v850 = vsel %vm253, %v831, %v835
    %v851 = vsel %vm253, %v833, %v837
    %v852 = vsel %vm253, %v843, %v831
    %v853 = vsel %vm253, %v845, %v833
    %v854 = vmul.f32 %v850, %v261
    %v855 = vmul.f32 %v848, %v265
    %v856 = vmul.f32 %v846, %v269
    %v857 = vmul.f32 %v852, %v273
    %v858 = vmul.f32 %v851, %v261
    %v859 = vmul.f32 %v849, %v265
    %v860 = vmul.f32 %v847, %v269
    %v861 = vmul.f32 %v853, %v273
    %862 = vset.pattern.permute.xlu0 5
    %863 = vperm.xlu0 %862, %v51
    %v864 = vpop.permute.xlu0 %863
    %866 = vset.pattern.permute.xlu0 5
    %867 = vperm.xlu0 %866, %v52
    %v868 = vpop.permute.xlu0 %867
    %v870 = vmul.f32 %v854, %v864
    %v871 = vmul.f32 %v855, %v864
    %v872 = vmul.f32 %v856, %v864
    %v873 = vmul.f32 %v857, %v864
    %v874 = vmul.f32 %v858, %v868
    %v875 = vmul.f32 %v859, %v868
    %v876 = vmul.f32 %v860, %v868
    %v877 = vmul.f32 %v861, %v868
    %878 = vrot.lane.b32.xlu0 %v612, 113
    %v879 = vpop.permute.xlu0 %878
    %880 = vrot.lane.b32.xlu0 %v616, 113
    %v881 = vpop.permute.xlu0 %880
    %882 = vrot.lane.b32.xlu0 %v613, 113
    %v883 = vpop.permute.xlu0 %882
    %884 = vrot.lane.b32.xlu0 %v617, 113
    %v885 = vpop.permute.xlu0 %884
    %886 = vrot.lane.b32.xlu0 %v614, 113
    %v887 = vpop.permute.xlu0 %886
    %888 = vrot.lane.b32.xlu0 %v618, 113
    %v889 = vpop.permute.xlu0 %888
    %890 = vrot.lane.b32.xlu0 %v615, 113
    %v891 = vpop.permute.xlu0 %890
    %892 = vrot.lane.b32.xlu0 %v619, 113
    %v893 = vpop.permute.xlu0 %892
    %v894 = vsel %vm294, %v887, %v891
    %v895 = vsel %vm294, %v889, %v893
    %v896 = vsel %vm294, %v883, %v887
    %v897 = vsel %vm294, %v885, %v889
    %v898 = vsel %vm294, %v879, %v883
    %v899 = vsel %vm294, %v881, %v885
    %v900 = vsel %vm294, %v891, %v879
    %v901 = vsel %vm294, %v893, %v881
    %v902 = vmul.f32 %v898, %v302
    %v903 = vmul.f32 %v896, %v306
    %v904 = vmul.f32 %v894, %v310
    %v905 = vmul.f32 %v900, %v314
    %v906 = vmul.f32 %v899, %v302
    %v907 = vmul.f32 %v897, %v306
    %v908 = vmul.f32 %v895, %v310
    %v909 = vmul.f32 %v901, %v314
    %910 = vset.pattern.permute.xlu0 6
    %911 = vperm.xlu0 %910, %v51
    %v912 = vpop.permute.xlu0 %911
    %914 = vset.pattern.permute.xlu0 6
    %915 = vperm.xlu0 %914, %v52
    %v916 = vpop.permute.xlu0 %915
    %v918 = vmul.f32 %v902, %v912
    %v919 = vmul.f32 %v903, %v912
    %v920 = vmul.f32 %v904, %v912
    %v921 = vmul.f32 %v905, %v912
    %v922 = vmul.f32 %v906, %v916
    %v923 = vmul.f32 %v907, %v916
    %v924 = vmul.f32 %v908, %v916
    %v925 = vmul.f32 %v909, %v916
    %926 = vrot.lane.b32.xlu0 %v612, 112
    %v927 = vpop.permute.xlu0 %926
    %928 = vrot.lane.b32.xlu0 %v616, 112
    %v929 = vpop.permute.xlu0 %928
    %930 = vrot.lane.b32.xlu0 %v613, 112
    %v931 = vpop.permute.xlu0 %930
    %932 = vrot.lane.b32.xlu0 %v617, 112
    %v933 = vpop.permute.xlu0 %932
    %934 = vrot.lane.b32.xlu0 %v614, 112
    %v935 = vpop.permute.xlu0 %934
    %936 = vrot.lane.b32.xlu0 %v618, 112
    %v937 = vpop.permute.xlu0 %936
    %938 = vrot.lane.b32.xlu0 %v615, 112
    %v939 = vpop.permute.xlu0 %938
    %940 = vrot.lane.b32.xlu0 %v619, 112
    %v941 = vpop.permute.xlu0 %940
    %v942 = vsel %vm335, %v935, %v939
    %v943 = vsel %vm335, %v937, %v941
    %v944 = vsel %vm335, %v931, %v935
    %v945 = vsel %vm335, %v933, %v937
    %v946 = vsel %vm335, %v927, %v931
    %v947 = vsel %vm335, %v929, %v933
    %v948 = vsel %vm335, %v939, %v927
    %v949 = vsel %vm335, %v941, %v929
    %v950 = vmul.f32 %v946, %v343
    %v951 = vmul.f32 %v944, %v347
    %v952 = vmul.f32 %v942, %v351
    %v953 = vmul.f32 %v948, %v355
    %v954 = vmul.f32 %v947, %v343
    %v955 = vmul.f32 %v945, %v347
    %v956 = vmul.f32 %v943, %v351
    %v957 = vmul.f32 %v949, %v355
    %958 = vset.pattern.permute.xlu0 7
    %959 = vperm.xlu0 %958, %v51
    %v960 = vpop.permute.xlu0 %959
    %962 = vset.pattern.permute.xlu0 7
    %963 = vperm.xlu0 %962, %v52
    %v964 = vpop.permute.xlu0 %963
    %v966 = vmul.f32 %v950, %v960
    %v967 = vmul.f32 %v951, %v960
    %v968 = vmul.f32 %v952, %v960
    %v969 = vmul.f32 %v953, %v960
    %v970 = vmul.f32 %v954, %v964
    %v971 = vmul.f32 %v955, %v964
    %v972 = vmul.f32 %v956, %v964
    %v973 = vmul.f32 %v957, %v964
    %974 = vrot.lane.b32.xlu0 %v612, 111
    %v975 = vpop.permute.xlu0 %974
    %976 = vrot.lane.b32.xlu0 %v616, 111
    %v977 = vpop.permute.xlu0 %976
    %978 = vrot.lane.b32.xlu0 %v613, 111
    %v979 = vpop.permute.xlu0 %978
    %980 = vrot.lane.b32.xlu0 %v617, 111
    %v981 = vpop.permute.xlu0 %980
    %982 = vrot.lane.b32.xlu0 %v614, 111
    %v983 = vpop.permute.xlu0 %982
    %984 = vrot.lane.b32.xlu0 %v618, 111
    %v985 = vpop.permute.xlu0 %984
    %986 = vrot.lane.b32.xlu0 %v615, 111
    %v987 = vpop.permute.xlu0 %986
    %988 = vrot.lane.b32.xlu0 %v619, 111
    %v989 = vpop.permute.xlu0 %988
    %v990 = vsel %vm376, %v983, %v987
    %v991 = vsel %vm376, %v985, %v989
    %v992 = vsel %vm376, %v979, %v983
    %v993 = vsel %vm376, %v981, %v985
    %v994 = vsel %vm376, %v975, %v979
    %v995 = vsel %vm376, %v977, %v981
    %v996 = vsel %vm376, %v987, %v975
    %v997 = vsel %vm376, %v989, %v977
    %v998 = vmul.f32 %v994, %v384
    %v999 = vmul.f32 %v992, %v388
    %v1000 = vmul.f32 %v990, %v392
    %v1001 = vmul.f32 %v996, %v396
    %v1002 = vmul.f32 %v995, %v384
    %v1003 = vmul.f32 %v993, %v388
    %v1004 = vmul.f32 %v991, %v392
    %v1005 = vmul.f32 %v997, %v396
    %1006 = vset.pattern.permute.xlu0 8
    %1007 = vperm.xlu0 %1006, %v51
    %v1008 = vpop.permute.xlu0 %1007
    %1010 = vset.pattern.permute.xlu0 8
    %1011 = vperm.xlu0 %1010, %v52
    %v1012 = vpop.permute.xlu0 %1011
    %v1014 = vmul.f32 %v998, %v1008
    %v1015 = vmul.f32 %v999, %v1008
    %v1016 = vmul.f32 %v1000, %v1008
    %v1017 = vmul.f32 %v1001, %v1008
    %v1018 = vmul.f32 %v1002, %v1012
    %v1019 = vmul.f32 %v1003, %v1012
    %v1020 = vmul.f32 %v1004, %v1012
    %v1021 = vmul.f32 %v1005, %v1012
    %v1022 = vadd.f32 %v630, %v678
    %v1023 = vadd.f32 %v631, %v679
    %v1024 = vadd.f32 %v632, %v680
    %v1025 = vadd.f32 %v633, %v681
    %v1026 = vadd.f32 %v634, %v682
    %v1027 = vadd.f32 %v635, %v683
    %v1028 = vadd.f32 %v636, %v684
    %v1029 = vadd.f32 %v637, %v685
    %v1030 = vadd.f32 %v726, %v774
    %v1031 = vadd.f32 %v727, %v775
    %v1032 = vadd.f32 %v728, %v776
    %v1033 = vadd.f32 %v729, %v777
    %v1034 = vadd.f32 %v730, %v778
    %v1035 = vadd.f32 %v731, %v779
    %v1036 = vadd.f32 %v732, %v780
    %v1037 = vadd.f32 %v733, %v781
    %v1038 = vadd.f32 %v822, %v870
    %v1039 = vadd.f32 %v823, %v871
    %v1040 = vadd.f32 %v824, %v872
    %v1041 = vadd.f32 %v825, %v873
    %v1042 = vadd.f32 %v826, %v874
    %v1043 = vadd.f32 %v827, %v875
    %v1044 = vadd.f32 %v828, %v876
    %v1045 = vadd.f32 %v829, %v877
    %v1046 = vadd.f32 %v918, %v966
    %v1047 = vadd.f32 %v919, %v967
    %v1048 = vadd.f32 %v920, %v968
    %v1049 = vadd.f32 %v921, %v969
    %v1050 = vadd.f32 %v922, %v970
    %v1051 = vadd.f32 %v923, %v971
    %v1052 = vadd.f32 %v924, %v972
    %v1053 = vadd.f32 %v925, %v973
    %v1054 = vadd.f32 %v1022, %v1030
    %v1055 = vadd.f32 %v1023, %v1031
    %v1056 = vadd.f32 %v1024, %v1032
    %v1057 = vadd.f32 %v1025, %v1033
    %v1058 = vadd.f32 %v1026, %v1034
    %v1059 = vadd.f32 %v1027, %v1035
    %v1060 = vadd.f32 %v1028, %v1036
    %v1061 = vadd.f32 %v1029, %v1037
    %v1062 = vadd.f32 %v1038, %v1046
    %v1063 = vadd.f32 %v1039, %v1047
    %v1064 = vadd.f32 %v1040, %v1048
    %v1065 = vadd.f32 %v1041, %v1049
    %v1066 = vadd.f32 %v1042, %v1050
    %v1067 = vadd.f32 %v1043, %v1051
    %v1068 = vadd.f32 %v1044, %v1052
    %v1069 = vadd.f32 %v1045, %v1053
    %v1070 = vadd.f32 %v1054, %v1062
    %v1071 = vadd.f32 %v1055, %v1063
    %v1072 = vadd.f32 %v1056, %v1064
    %v1073 = vadd.f32 %v1057, %v1065
    %v1074 = vadd.f32 %v1058, %v1066
    %v1075 = vadd.f32 %v1059, %v1067
    %v1076 = vadd.f32 %v1060, %v1068
    %v1077 = vadd.f32 %v1061, %v1069
    %v1078 = vadd.f32 %v1070, %v1014
    %v1079 = vadd.f32 %v1071, %v1015
    %v1080 = vadd.f32 %v1072, %v1016
    %v1081 = vadd.f32 %v1073, %v1017
    %v1082 = vadd.f32 %v1074, %v1018
    %v1083 = vadd.f32 %v1075, %v1019
    %v1084 = vadd.f32 %v1076, %v1020
    %v1085 = vadd.f32 %v1077, %v1021
    %1086 = vset.pattern.permute.xlu0 1
    %1087 = vperm.xlu0 %1086, %v63
    %v1088 = vpop.permute.xlu0 %1087
    %1090 = vset.pattern.permute.xlu0 1
    %1091 = vperm.xlu0 %1090, %v64
    %v1092 = vpop.permute.xlu0 %1091
    %vm1094 = vcmask 130048
    %v1096 = vsel %vm1094, %v59, 0
    %v1099 = vsel %vm1094, %v60, 0
    %1101 = vmatprep.subr.mxu0 %v1079
    %1102 = vmatpush1.msra.mxu0 %v1078
    %1103 = vmatprep.subr.mxu0 %v1083
    %1104 = vmatpush1.msra.mxu0 %v1082
    %1105 = vmatprep.subr.mxu0 0.0
    %1106 = vmatpush1.msra.mxu0 0.0
    %1107 = vmatprep.subr.mxu0 0.0
    %1108 = vmatpush1.msra.mxu0 0.0
    %1109 = vmatprep.subr.mxu0 0.0
    %1110 = vmatpush1.msra.mxu0 0.0
    %1111 = vmatprep.subr.mxu0 0.0
    %1112 = vmatpush1.msra.mxu0 0.0
    %1113 = vmatprep.subr.mxu0 0.0
    %1114 = vmatpush1.msra.mxu0 0.0
    %1115 = vmatprep.subr.mxu0 0.0
    %1116 = vmatpush1.msra.mxu0 0.0
    %1117 = vmatprep.subr.mxu0 0.0
    %1118 = vmatpush1.msra.mxu0 0.0
    %1119 = vmatprep.subr.mxu0 0.0
    %1120 = vmatpush1.msra.mxu0 0.0
    %1121 = vmatprep.subr.mxu0 0.0
    %1122 = vmatpush1.msra.mxu0 0.0
    %1123 = vmatprep.subr.mxu0 0.0
    %1124 = vmatpush1.msra.mxu0 0.0
    %1125 = vmatprep.subr.mxu0 0.0
    %1126 = vmatpush1.msra.mxu0 0.0
    %1127 = vmatprep.subr.mxu0 0.0
    %1128 = vmatpush1.msra.mxu0 0.0
    %1129 = vmatprep.subr.mxu0 0.0
    %1130 = vmatpush1.msra.mxu0 0.0
    %1131 = vmatprep.subr.mxu0 0.0
    %1132 = vmatpush1.msra.mxu0 0.0
    %1133 = vmatprep.subr.mxu0 0.0
    %1134 = vmatpush1.msra.mxu0 0.0
    %1135 = vmatprep.subr.mxu0 0.0
    %1136 = vmatpush1.msra.mxu0 0.0
    %1137 = vmatprep.subr.mxu0 0.0
    %1138 = vmatpush1.msra.mxu0 0.0
    %1139 = vmatprep.subr.mxu0 0.0
    %1140 = vmatpush1.msra.mxu0 0.0
    %1141 = vmatprep.subr.mxu0 0.0
    %1142 = vmatpush1.msra.mxu0 0.0
    %1143 = vmatprep.subr.mxu0 0.0
    %1144 = vmatpush1.msra.mxu0 0.0
    %1145 = vmatprep.subr.mxu0 0.0
    %1146 = vmatpush1.msra.mxu0 0.0
    %1147 = vmatprep.subr.mxu0 0.0
    %1148 = vmatpush1.msra.mxu0 0.0
    %1149 = vmatprep.subr.mxu0 0.0
    %1150 = vmatpush1.msra.mxu0 0.0
    %1151 = vmatprep.subr.mxu0 0.0
    %1152 = vmatpush1.msra.mxu0 0.0
    %1153 = vmatprep.subr.mxu0 0.0
    %1154 = vmatpush1.msra.mxu0 0.0
    %1155 = vmatprep.subr.mxu0 0.0
    %1156 = vmatpush1.msra.mxu0 0.0
    %1157 = vmatprep.subr.mxu0 0.0
    %1158 = vmatpush1.msra.mxu0 0.0
    %1159 = vmatprep.subr.mxu0 0.0
    %1160 = vmatpush1.msra.mxu0 0.0
    %1161 = vmatprep.subr.mxu0 0.0
    %1162 = vmatpush1.msra.mxu0 0.0
    %1163 = vmatprep.subr.mxu0 0.0
    %1164 = vmatpush1.msra.mxu0 0.0
    %1165 = vmatprep.mubr.f32.mxu0 0.0
    %1166 = vmatmul.mubr.f32.gmra.mrb[0].mxu0 %v1096
    %v1167 = vpop.f32.mrb[0].mxu0
    %v1168 = vadd.f32 %v1088, %v1167
    %v1169 = vpop.f32.mrb[0].mxu0
    %v1170 = vadd.f32 %v1088, %v1169
    %1171 = vmatprep.mubr.f32.mxu0 0.0
    %1172 = vmatmul.mubr.f32.gmra.mrb[0].mxu0 %v1099
    %v1173 = vpop.f32.mrb[0].mxu0
    %v1174 = vadd.f32 %v1092, %v1173
    %v1175 = vpop.f32.mrb[0].mxu0
    %v1176 = vadd.f32 %v1092, %v1175
    %1177 = vdwg.mxu0
    %1178 = vmatprep.subr.mxu0 %v1081
    %1179 = vmatpush1.msra.mxu0 %v1080
    %1180 = vmatprep.subr.mxu0 %v1085
    %1181 = vmatpush1.msra.mxu0 %v1084
    %1182 = vmatprep.subr.mxu0 0.0
    %1183 = vmatpush1.msra.mxu0 0.0
    %1184 = vmatprep.subr.mxu0 0.0
    %1185 = vmatpush1.msra.mxu0 0.0
    %1186 = vmatprep.subr.mxu0 0.0
    %1187 = vmatpush1.msra.mxu0 0.0
    %1188 = vmatprep.subr.mxu0 0.0
    %1189 = vmatpush1.msra.mxu0 0.0
    %1190 = vmatprep.subr.mxu0 0.0
    %1191 = vmatpush1.msra.mxu0 0.0
    %1192 = vmatprep.subr.mxu0 0.0
    %1193 = vmatpush1.msra.mxu0 0.0
    %1194 = vmatprep.subr.mxu0 0.0
    %1195 = vmatpush1.msra.mxu0 0.0
    %1196 = vmatprep.subr.mxu0 0.0
    %1197 = vmatpush1.msra.mxu0 0.0
    %1198 = vmatprep.subr.mxu0 0.0
    %1199 = vmatpush1.msra.mxu0 0.0
    %1200 = vmatprep.subr.mxu0 0.0
    %1201 = vmatpush1.msra.mxu0 0.0
    %1202 = vmatprep.subr.mxu0 0.0
    %1203 = vmatpush1.msra.mxu0 0.0
    %1204 = vmatprep.subr.mxu0 0.0
    %1205 = vmatpush1.msra.mxu0 0.0
    %1206 = vmatprep.subr.mxu0 0.0
    %1207 = vmatpush1.msra.mxu0 0.0
    %1208 = vmatprep.subr.mxu0 0.0
    %1209 = vmatpush1.msra.mxu0 0.0
    %1210 = vmatprep.subr.mxu0 0.0
    %1211 = vmatpush1.msra.mxu0 0.0
    %1212 = vmatprep.subr.mxu0 0.0
    %1213 = vmatpush1.msra.mxu0 0.0
    %1214 = vmatprep.subr.mxu0 0.0
    %1215 = vmatpush1.msra.mxu0 0.0
    %1216 = vmatprep.subr.mxu0 0.0
    %1217 = vmatpush1.msra.mxu0 0.0
    %1218 = vmatprep.subr.mxu0 0.0
    %1219 = vmatpush1.msra.mxu0 0.0
    %1220 = vmatprep.subr.mxu0 0.0
    %1221 = vmatpush1.msra.mxu0 0.0
    %1222 = vmatprep.subr.mxu0 0.0
    %1223 = vmatpush1.msra.mxu0 0.0
    %1224 = vmatprep.subr.mxu0 0.0
    %1225 = vmatpush1.msra.mxu0 0.0
    %1226 = vmatprep.subr.mxu0 0.0
    %1227 = vmatpush1.msra.mxu0 0.0
    %1228 = vmatprep.subr.mxu0 0.0
    %1229 = vmatpush1.msra.mxu0 0.0
    %1230 = vmatprep.subr.mxu0 0.0
    %1231 = vmatpush1.msra.mxu0 0.0
    %1232 = vmatprep.subr.mxu0 0.0
    %1233 = vmatpush1.msra.mxu0 0.0
    %1234 = vmatprep.subr.mxu0 0.0
    %1235 = vmatpush1.msra.mxu0 0.0
    %1236 = vmatprep.subr.mxu0 0.0
    %1237 = vmatpush1.msra.mxu0 0.0
    %1238 = vmatprep.subr.mxu0 0.0
    %1239 = vmatpush1.msra.mxu0 0.0
    %1240 = vmatprep.subr.mxu0 0.0
    %1241 = vmatpush1.msra.mxu0 0.0
    %1242 = vmatprep.mubr.f32.mxu0 0.0
    %1243 = vmatmul.mubr.f32.gmra.mrb[0].mxu0 %v1096
    %v1244 = vpop.f32.mrb[0].mxu0
    %v1245 = vadd.f32 %v1088, %v1244
    %v1246 = vpop.f32.mrb[0].mxu0
    %v1247 = vadd.f32 %v1088, %v1246
    %1248 = vmatprep.mubr.f32.mxu0 0.0
    %1249 = vmatmul.mubr.f32.gmra.mrb[0].mxu0 %v1099
    %v1250 = vpop.f32.mrb[0].mxu0
    %v1251 = vadd.f32 %v1092, %v1250
    %v1252 = vpop.f32.mrb[0].mxu0
    %v1253 = vadd.f32 %v1092, %v1252
    %1254 = vdwg.mxu0
    %v1255 = vmax.f32 %v1168, 0.0
    %v1256 = vmax.f32 %v1170, 0.0
    %v1257 = vmax.f32 %v1245, 0.0
    %v1258 = vmax.f32 %v1247, 0.0
    %v1259 = vmax.f32 %v1174, 0.0
    %v1260 = vmax.f32 %v1176, 0.0
    %v1261 = vmax.f32 %v1251, 0.0
    %v1262 = vmax.f32 %v1253, 0.0
    %1264 = vset.pattern.permute.xlu0 4
    %1265 = vperm.xlu0 %1264, %v53
    %v1266 = vpop.permute.xlu0 %1265
    %1269 = vset.pattern.permute.xlu0 4
    %1270 = vperm.xlu0 %1269, %v54
    %v1271 = vpop.permute.xlu0 %1270
    %v1273 = vmul.f32 %v1255, %v1266
    %v1274 = vmul.f32 %v1256, %v1266
    %v1275 = vmul.f32 %v1257, %v1266
    %v1276 = vmul.f32 %v1258, %v1266
    %v1277 = vmul.f32 %v1259, %v1271
    %v1278 = vmul.f32 %v1260, %v1271
    %v1279 = vmul.f32 %v1261, %v1271
    %v1280 = vmul.f32 %v1262, %v1271
    %1281 = vrot.lane.b32.xlu0 %v1255, 17
    %v1282 = vpop.permute.xlu0 %1281
    %1283 = vrot.lane.b32.xlu0 %v1259, 17
    %v1284 = vpop.permute.xlu0 %1283
    %1285 = vrot.lane.b32.xlu0 %v1256, 17
    %v1286 = vpop.permute.xlu0 %1285
    %1287 = vrot.lane.b32.xlu0 %v1260, 17
    %v1288 = vpop.permute.xlu0 %1287
    %1289 = vrot.lane.b32.xlu0 %v1257, 17
    %v1290 = vpop.permute.xlu0 %1289
    %1291 = vrot.lane.b32.xlu0 %v1261, 17
    %v1292 = vpop.permute.xlu0 %1291
    %1293 = vrot.lane.b32.xlu0 %v1258, 17
    %v1294 = vpop.permute.xlu0 %1293
    %1295 = vrot.lane.b32.xlu0 %v1262, 17
    %v1296 = vpop.permute.xlu0 %1295
    %v1297 = vsel %vm89, %v1290, %v1294
    %v1298 = vsel %vm89, %v1292, %v1296
    %v1299 = vsel %vm89, %v1286, %v1290
    %v1300 = vsel %vm89, %v1288, %v1292
    %v1301 = vsel %vm89, %v1282, %v1286
    %v1302 = vsel %vm89, %v1284, %v1288
    %v1303 = vsel %vm89, %v1294, %v1282
    %v1304 = vsel %vm89, %v1296, %v1284
    %v1305 = vmul.f32 %v1303, %v97
    %v1306 = vmul.f32 %v1301, %v101
    %v1307 = vmul.f32 %v1299, %v105
    %v1308 = vmul.f32 %v1297, %v109
    %v1309 = vmul.f32 %v1304, %v97
    %v1310 = vmul.f32 %v1302, %v101
    %v1311 = vmul.f32 %v1300, %v105
    %v1312 = vmul.f32 %v1298, %v109
    %1313 = vset.pattern.permute.xlu0 0
    %1314 = vperm.xlu0 %1313, %v53
    %v1315 = vpop.permute.xlu0 %1314
    %1317 = vset.pattern.permute.xlu0 0
    %1318 = vperm.xlu0 %1317, %v54
    %v1319 = vpop.permute.xlu0 %1318
    %v1321 = vmul.f32 %v1305, %v1315
    %v1322 = vmul.f32 %v1306, %v1315
    %v1323 = vmul.f32 %v1307, %v1315
    %v1324 = vmul.f32 %v1308, %v1315
    %v1325 = vmul.f32 %v1309, %v1319
    %v1326 = vmul.f32 %v1310, %v1319
    %v1327 = vmul.f32 %v1311, %v1319
    %v1328 = vmul.f32 %v1312, %v1319
    %1329 = vrot.lane.b32.xlu0 %v1255, 16
    %v1330 = vpop.permute.xlu0 %1329
    %1331 = vrot.lane.b32.xlu0 %v1259, 16
    %v1332 = vpop.permute.xlu0 %1331
    %1333 = vrot.lane.b32.xlu0 %v1256, 16
    %v1334 = vpop.permute.xlu0 %1333
    %1335 = vrot.lane.b32.xlu0 %v1260, 16
    %v1336 = vpop.permute.xlu0 %1335
    %1337 = vrot.lane.b32.xlu0 %v1257, 16
    %v1338 = vpop.permute.xlu0 %1337
    %1339 = vrot.lane.b32.xlu0 %v1261, 16
    %v1340 = vpop.permute.xlu0 %1339
    %1341 = vrot.lane.b32.xlu0 %v1258, 16
    %v1342 = vpop.permute.xlu0 %1341
    %1343 = vrot.lane.b32.xlu0 %v1262, 16
    %v1344 = vpop.permute.xlu0 %1343
    %v1345 = vsel %vm130, %v1338, %v1342
    %v1346 = vsel %vm130, %v1340, %v1344
    %v1347 = vsel %vm130, %v1334, %v1338
    %v1348 = vsel %vm130, %v1336, %v1340
    %v1349 = vsel %vm130, %v1330, %v1334
    %v1350 = vsel %vm130, %v1332, %v1336
    %v1351 = vsel %vm130, %v1342, %v1330
    %v1352 = vsel %vm130, %v1344, %v1332
    %v1353 = vmul.f32 %v1351, %v138
    %v1354 = vmul.f32 %v1349, %v142
    %v1355 = vmul.f32 %v1347, %v146
    %v1356 = vmul.f32 %v1345, %v150
    %v1357 = vmul.f32 %v1352, %v138
    %v1358 = vmul.f32 %v1350, %v142
    %v1359 = vmul.f32 %v1348, %v146
    %v1360 = vmul.f32 %v1346, %v150
    %1361 = vset.pattern.permute.xlu0 1
    %1362 = vperm.xlu0 %1361, %v53
    %v1363 = vpop.permute.xlu0 %1362
    %1365 = vset.pattern.permute.xlu0 1
    %1366 = vperm.xlu0 %1365, %v54
    %v1367 = vpop.permute.xlu0 %1366
    %v1369 = vmul.f32 %v1353, %v1363
    %v1370 = vmul.f32 %v1354, %v1363
    %v1371 = vmul.f32 %v1355, %v1363
    %v1372 = vmul.f32 %v1356, %v1363
    %v1373 = vmul.f32 %v1357, %v1367
    %v1374 = vmul.f32 %v1358, %v1367
    %v1375 = vmul.f32 %v1359, %v1367
    %v1376 = vmul.f32 %v1360, %v1367
    %1377 = vrot.lane.b32.xlu0 %v1255, 15
    %v1378 = vpop.permute.xlu0 %1377
    %1379 = vrot.lane.b32.xlu0 %v1259, 15
    %v1380 = vpop.permute.xlu0 %1379
    %1381 = vrot.lane.b32.xlu0 %v1256, 15
    %v1382 = vpop.permute.xlu0 %1381
    %1383 = vrot.lane.b32.xlu0 %v1260, 15
    %v1384 = vpop.permute.xlu0 %1383
    %1385 = vrot.lane.b32.xlu0 %v1257, 15
    %v1386 = vpop.permute.xlu0 %1385
    %1387 = vrot.lane.b32.xlu0 %v1261, 15
    %v1388 = vpop.permute.xlu0 %1387
    %1389 = vrot.lane.b32.xlu0 %v1258, 15
    %v1390 = vpop.permute.xlu0 %1389
    %1391 = vrot.lane.b32.xlu0 %v1262, 15
    %v1392 = vpop.permute.xlu0 %1391
    %v1393 = vsel %vm171, %v1386, %v1390
    %v1394 = vsel %vm171, %v1388, %v1392
    %v1395 = vsel %vm171, %v1382, %v1386
    %v1396 = vsel %vm171, %v1384, %v1388
    %v1397 = vsel %vm171, %v1378, %v1382
    %v1398 = vsel %vm171, %v1380, %v1384
    %v1399 = vsel %vm171, %v1390, %v1378
    %v1400 = vsel %vm171, %v1392, %v1380
    %v1401 = vmul.f32 %v1399, %v179
    %v1402 = vmul.f32 %v1397, %v183
    %v1403 = vmul.f32 %v1395, %v187
    %v1404 = vmul.f32 %v1393, %v191
    %v1405 = vmul.f32 %v1400, %v179
    %v1406 = vmul.f32 %v1398, %v183
    %v1407 = vmul.f32 %v1396, %v187
    %v1408 = vmul.f32 %v1394, %v191
    %1409 = vset.pattern.permute.xlu0 2
    %1410 = vperm.xlu0 %1409, %v53
    %v1411 = vpop.permute.xlu0 %1410
    %1413 = vset.pattern.permute.xlu0 2
    %1414 = vperm.xlu0 %1413, %v54
    %v1415 = vpop.permute.xlu0 %1414
    %v1417 = vmul.f32 %v1401, %v1411
    %v1418 = vmul.f32 %v1402, %v1411
    %v1419 = vmul.f32 %v1403, %v1411
    %v1420 = vmul.f32 %v1404, %v1411
    %v1421 = vmul.f32 %v1405, %v1415
    %v1422 = vmul.f32 %v1406, %v1415
    %v1423 = vmul.f32 %v1407, %v1415
    %v1424 = vmul.f32 %v1408, %v1415
    %1425 = vrot.lane.b32.xlu0 %v1255, 1
    %v1426 = vpop.permute.xlu0 %1425
    %1427 = vrot.lane.b32.xlu0 %v1259, 1
    %v1428 = vpop.permute.xlu0 %1427
    %1429 = vrot.lane.b32.xlu0 %v1256, 1
    %v1430 = vpop.permute.xlu0 %1429
    %1431 = vrot.lane.b32.xlu0 %v1260, 1
    %v1432 = vpop.permute.xlu0 %1431
    %1433 = vrot.lane.b32.xlu0 %v1257, 1
    %v1434 = vpop.permute.xlu0 %1433
    %1435 = vrot.lane.b32.xlu0 %v1261, 1
    %v1436 = vpop.permute.xlu0 %1435
    %1437 = vrot.lane.b32.xlu0 %v1258, 1
    %v1438 = vpop.permute.xlu0 %1437
    %1439 = vrot.lane.b32.xlu0 %v1262, 1
    %v1440 = vpop.permute.xlu0 %1439
    %v1441 = vsel %vm212, %v1434, %v1438
    %v1442 = vsel %vm212, %v1436, %v1440
    %v1443 = vsel %vm212, %v1430, %v1434
    %v1444 = vsel %vm212, %v1432, %v1436
    %v1445 = vsel %vm212, %v1426, %v1430
    %v1446 = vsel %vm212, %v1428, %v1432
    %v1447 = vsel %vm212, %v1438, %v1426
    %v1448 = vsel %vm212, %v1440, %v1428
    %v1449 = vmul.f32 %v1447, %v220
    %v1450 = vmul.f32 %v1445, %v224
    %v1451 = vmul.f32 %v1443, %v228
    %v1452 = vmul.f32 %v1441, %v232
    %v1453 = vmul.f32 %v1448, %v220
    %v1454 = vmul.f32 %v1446, %v224
    %v1455 = vmul.f32 %v1444, %v228
    %v1456 = vmul.f32 %v1442, %v232
    %1457 = vset.pattern.permute.xlu0 3
    %1458 = vperm.xlu0 %1457, %v53
    %v1459 = vpop.permute.xlu0 %1458
    %1461 = vset.pattern.permute.xlu0 3
    %1462 = vperm.xlu0 %1461, %v54
    %v1463 = vpop.permute.xlu0 %1462
    %v1465 = vmul.f32 %v1449, %v1459
    %v1466 = vmul.f32 %v1450, %v1459
    %v1467 = vmul.f32 %v1451, %v1459
    %v1468 = vmul.f32 %v1452, %v1459
    %v1469 = vmul.f32 %v1453, %v1463
    %v1470 = vmul.f32 %v1454, %v1463
    %v1471 = vmul.f32 %v1455, %v1463
    %v1472 = vmul.f32 %v1456, %v1463
    %1473 = vrot.lane.b32.xlu0 %v1255, 127
    %v1474 = vpop.permute.xlu0 %1473
    %1475 = vrot.lane.b32.xlu0 %v1259, 127
    %v1476 = vpop.permute.xlu0 %1475
    %1477 = vrot.lane.b32.xlu0 %v1256, 127
    %v1478 = vpop.permute.xlu0 %1477
    %1479 = vrot.lane.b32.xlu0 %v1260, 127
    %v1480 = vpop.permute.xlu0 %1479
    %1481 = vrot.lane.b32.xlu0 %v1257, 127
    %v1482 = vpop.permute.xlu0 %1481
    %1483 = vrot.lane.b32.xlu0 %v1261, 127
    %v1484 = vpop.permute.xlu0 %1483
    %1485 = vrot.lane.b32.xlu0 %v1258, 127
    %v1486 = vpop.permute.xlu0 %1485
    %1487 = vrot.lane.b32.xlu0 %v1262, 127
    %v1488 = vpop.permute.xlu0 %1487
    %v1489 = vsel %vm253, %v1482, %v1486
    %v1490 = vsel %vm253, %v1484, %v1488
    %v1491 = vsel %vm253, %v1478, %v1482
    %v1492 = vsel %vm253, %v1480, %v1484
    %v1493 = vsel %vm253, %v1474, %v1478
    %v1494 = vsel %vm253, %v1476, %v1480
    %v1495 = vsel %vm253, %v1486, %v1474
    %v1496 = vsel %vm253, %v1488, %v1476
    %v1497 = vmul.f32 %v1493, %v261
    %v1498 = vmul.f32 %v1491, %v265
    %v1499 = vmul.f32 %v1489, %v269
    %v1500 = vmul.f32 %v1495, %v273
    %v1501 = vmul.f32 %v1494, %v261
    %v1502 = vmul.f32 %v1492, %v265
    %v1503 = vmul.f32 %v1490, %v269
    %v1504 = vmul.f32 %v1496, %v273
    %1505 = vset.pattern.permute.xlu0 5
    %1506 = vperm.xlu0 %1505, %v53
    %v1507 = vpop.permute.xlu0 %1506
    %1509 = vset.pattern.permute.xlu0 5
    %1510 = vperm.xlu0 %1509, %v54
    %v1511 = vpop.permute.xlu0 %1510
    %v1513 = vmul.f32 %v1497, %v1507
    %v1514 = vmul.f32 %v1498, %v1507
    %v1515 = vmul.f32 %v1499, %v1507
    %v1516 = vmul.f32 %v1500, %v1507
    %v1517 = vmul.f32 %v1501, %v1511
    %v1518 = vmul.f32 %v1502, %v1511
    %v1519 = vmul.f32 %v1503, %v1511
    %v1520 = vmul.f32 %v1504, %v1511
    %1521 = vrot.lane.b32.xlu0 %v1255, 113
    %v1522 = vpop.permute.xlu0 %1521
    %1523 = vrot.lane.b32.xlu0 %v1259, 113
    %v1524 = vpop.permute.xlu0 %1523
    %1525 = vrot.lane.b32.xlu0 %v1256, 113
    %v1526 = vpop.permute.xlu0 %1525
    %1527 = vrot.lane.b32.xlu0 %v1260, 113
    %v1528 = vpop.permute.xlu0 %1527
    %1529 = vrot.lane.b32.xlu0 %v1257, 113
    %v1530 = vpop.permute.xlu0 %1529
    %1531 = vrot.lane.b32.xlu0 %v1261, 113
    %v1532 = vpop.permute.xlu0 %1531
    %1533 = vrot.lane.b32.xlu0 %v1258, 113
    %v1534 = vpop.permute.xlu0 %1533
    %1535 = vrot.lane.b32.xlu0 %v1262, 113
    %v1536 = vpop.permute.xlu0 %1535
    %v1537 = vsel %vm294, %v1530, %v1534
    %v1538 = vsel %vm294, %v1532, %v1536
    %v1539 = vsel %vm294, %v1526, %v1530
    %v1540 = vsel %vm294, %v1528, %v1532
    %v1541 = vsel %vm294, %v1522, %v1526
    %v1542 = vsel %vm294, %v1524, %v1528
    %v1543 = vsel %vm294, %v1534, %v1522
    %v1544 = vsel %vm294, %v1536, %v1524
    %v1545 = vmul.f32 %v1541, %v302
    %v1546 = vmul.f32 %v1539, %v306
    %v1547 = vmul.f32 %v1537, %v310
    %v1548 = vmul.f32 %v1543, %v314
    %v1549 = vmul.f32 %v1542, %v302
    %v1550 = vmul.f32 %v1540, %v306
    %v1551 = vmul.f32 %v1538, %v310
    %v1552 = vmul.f32 %v1544, %v314
    %1553 = vset.pattern.permute.xlu0 6
    %1554 = vperm.xlu0 %1553, %v53
    %v1555 = vpop.permute.xlu0 %1554
    %1557 = vset.pattern.permute.xlu0 6
    %1558 = vperm.xlu0 %1557, %v54
    %v1559 = vpop.permute.xlu0 %1558
    %v1561 = vmul.f32 %v1545, %v1555
    %v1562 = vmul.f32 %v1546, %v1555
    %v1563 = vmul.f32 %v1547, %v1555
    %v1564 = vmul.f32 %v1548, %v1555
    %v1565 = vmul.f32 %v1549, %v1559
    %v1566 = vmul.f32 %v1550, %v1559
    %v1567 = vmul.f32 %v1551, %v1559
    %v1568 = vmul.f32 %v1552, %v1559
    %1569 = vrot.lane.b32.xlu0 %v1255, 112
    %v1570 = vpop.permute.xlu0 %1569
    %1571 = vrot.lane.b32.xlu0 %v1259, 112
    %v1572 = vpop.permute.xlu0 %1571
    %1573 = vrot.lane.b32.xlu0 %v1256, 112
    %v1574 = vpop.permute.xlu0 %1573
    %1575 = vrot.lane.b32.xlu0 %v1260, 112
    %v1576 = vpop.permute.xlu0 %1575
    %1577 = vrot.lane.b32.xlu0 %v1257, 112
    %v1578 = vpop.permute.xlu0 %1577
    %1579 = vrot.lane.b32.xlu0 %v1261, 112
    %v1580 = vpop.permute.xlu0 %1579
    %1581 = vrot.lane.b32.xlu0 %v1258, 112
    %v1582 = vpop.permute.xlu0 %1581
    %1583 = vrot.lane.b32.xlu0 %v1262, 112
    %v1584 = vpop.permute.xlu0 %1583
    %v1585 = vsel %vm335, %v1578, %v1582
    %v1586 = vsel %vm335, %v1580, %v1584
    %v1587 = vsel %vm335, %v1574, %v1578
    %v1588 = vsel %vm335, %v1576, %v1580
    %v1589 = vsel %vm335, %v1570, %v1574
    %v1590 = vsel %vm335, %v1572, %v1576
    %v1591 = vsel %vm335, %v1582, %v1570
    %v1592 = vsel %vm335, %v1584, %v1572
    %v1593 = vmul.f32 %v1589, %v343
    %v1594 = vmul.f32 %v1587, %v347
    %v1595 = vmul.f32 %v1585, %v351
    %v1596 = vmul.f32 %v1591, %v355
    %v1597 = vmul.f32 %v1590, %v343
    %v1598 = vmul.f32 %v1588, %v347
    %v1599 = vmul.f32 %v1586, %v351
    %v1600 = vmul.f32 %v1592, %v355
    %1601 = vset.pattern.permute.xlu0 7
    %1602 = vperm.xlu0 %1601, %v53
    %v1603 = vpop.permute.xlu0 %1602
    %1605 = vset.pattern.permute.xlu0 7
    %1606 = vperm.xlu0 %1605, %v54
    %v1607 = vpop.permute.xlu0 %1606
    %v1609 = vmul.f32 %v1593, %v1603
    %v1610 = vmul.f32 %v1594, %v1603
    %v1611 = vmul.f32 %v1595, %v1603
    %v1612 = vmul.f32 %v1596, %v1603
    %v1613 = vmul.f32 %v1597, %v1607
    %v1614 = vmul.f32 %v1598, %v1607
    %v1615 = vmul.f32 %v1599, %v1607
    %v1616 = vmul.f32 %v1600, %v1607
    %1617 = vrot.lane.b32.xlu0 %v1255, 111
    %v1618 = vpop.permute.xlu0 %1617
    %1619 = vrot.lane.b32.xlu0 %v1259, 111
    %v1620 = vpop.permute.xlu0 %1619
    %1621 = vrot.lane.b32.xlu0 %v1256, 111
    %v1622 = vpop.permute.xlu0 %1621
    %1623 = vrot.lane.b32.xlu0 %v1260, 111
    %v1624 = vpop.permute.xlu0 %1623
    %1625 = vrot.lane.b32.xlu0 %v1257, 111
    %v1626 = vpop.permute.xlu0 %1625
    %1627 = vrot.lane.b32.xlu0 %v1261, 111
    %v1628 = vpop.permute.xlu0 %1627
    %1629 = vrot.lane.b32.xlu0 %v1258, 111
    %v1630 = vpop.permute.xlu0 %1629
    %1631 = vrot.lane.b32.xlu0 %v1262, 111
    %v1632 = vpop.permute.xlu0 %1631
    %v1633 = vsel %vm376, %v1626, %v1630
    %v1634 = vsel %vm376, %v1628, %v1632
    %v1635 = vsel %vm376, %v1622, %v1626
    %v1636 = vsel %vm376, %v1624, %v1628
    %v1637 = vsel %vm376, %v1618, %v1622
    %v1638 = vsel %vm376, %v1620, %v1624
    %v1639 = vsel %vm376, %v1630, %v1618
    %v1640 = vsel %vm376, %v1632, %v1620
    %v1641 = vmul.f32 %v1637, %v384
    %v1642 = vmul.f32 %v1635, %v388
    %v1643 = vmul.f32 %v1633, %v392
    %v1644 = vmul.f32 %v1639, %v396
    %v1645 = vmul.f32 %v1638, %v384
    %v1646 = vmul.f32 %v1636, %v388
    %v1647 = vmul.f32 %v1634, %v392
    %v1648 = vmul.f32 %v1640, %v396
    %1649 = vset.pattern.permute.xlu0 8
    %1650 = vperm.xlu0 %1649, %v53
    %v1651 = vpop.permute.xlu0 %1650
    %1653 = vset.pattern.permute.xlu0 8
    %1654 = vperm.xlu0 %1653, %v54
    %v1655 = vpop.permute.xlu0 %1654
    %v1657 = vmul.f32 %v1641, %v1651
    %v1658 = vmul.f32 %v1642, %v1651
    %v1659 = vmul.f32 %v1643, %v1651
    %v1660 = vmul.f32 %v1644, %v1651
    %v1661 = vmul.f32 %v1645, %v1655
    %v1662 = vmul.f32 %v1646, %v1655
    %v1663 = vmul.f32 %v1647, %v1655
    %v1664 = vmul.f32 %v1648, %v1655
    %v1665 = vadd.f32 %v1273, %v1321
    %v1666 = vadd.f32 %v1274, %v1322
    %v1667 = vadd.f32 %v1275, %v1323
    %v1668 = vadd.f32 %v1276, %v1324
    %v1669 = vadd.f32 %v1277, %v1325
    %v1670 = vadd.f32 %v1278, %v1326
    %v1671 = vadd.f32 %v1279, %v1327
    %v1672 = vadd.f32 %v1280, %v1328
    %v1673 = vadd.f32 %v1369, %v1417
    %v1674 = vadd.f32 %v1370, %v1418
    %v1675 = vadd.f32 %v1371, %v1419
    %v1676 = vadd.f32 %v1372, %v1420
    %v1677 = vadd.f32 %v1373, %v1421
    %v1678 = vadd.f32 %v1374, %v1422
    %v1679 = vadd.f32 %v1375, %v1423
    %v1680 = vadd.f32 %v1376, %v1424
    %v1681 = vadd.f32 %v1465, %v1513
    %v1682 = vadd.f32 %v1466, %v1514
    %v1683 = vadd.f32 %v1467, %v1515
    %v1684 = vadd.f32 %v1468, %v1516
    %v1685 = vadd.f32 %v1469, %v1517
    %v1686 = vadd.f32 %v1470, %v1518
    %v1687 = vadd.f32 %v1471, %v1519
    %v1688 = vadd.f32 %v1472, %v1520
    %v1689 = vadd.f32 %v1561, %v1609
    %v1690 = vadd.f32 %v1562, %v1610
    %v1691 = vadd.f32 %v1563, %v1611
    %v1692 = vadd.f32 %v1564, %v1612
    %v1693 = vadd.f32 %v1565, %v1613
    %v1694 = vadd.f32 %v1566, %v1614
    %v1695 = vadd.f32 %v1567, %v1615
    %v1696 = vadd.f32 %v1568, %v1616
    %v1697 = vadd.f32 %v1665, %v1673
    %v1698 = vadd.f32 %v1666, %v1674
    %v1699 = vadd.f32 %v1667, %v1675
    %v1700 = vadd.f32 %v1668, %v1676
    %v1701 = vadd.f32 %v1669, %v1677
    %v1702 = vadd.f32 %v1670, %v1678
    %v1703 = vadd.f32 %v1671, %v1679
    %v1704 = vadd.f32 %v1672, %v1680
    %v1705 = vadd.f32 %v1681, %v1689
    %v1706 = vadd.f32 %v1682, %v1690
    %v1707 = vadd.f32 %v1683, %v1691
    %v1708 = vadd.f32 %v1684, %v1692
    %v1709 = vadd.f32 %v1685, %v1693
    %v1710 = vadd.f32 %v1686, %v1694
    %v1711 = vadd.f32 %v1687, %v1695
    %v1712 = vadd.f32 %v1688, %v1696
    %v1713 = vadd.f32 %v1697, %v1705
    %v1714 = vadd.f32 %v1698, %v1706
    %v1715 = vadd.f32 %v1699, %v1707
    %v1716 = vadd.f32 %v1700, %v1708
    %v1717 = vadd.f32 %v1701, %v1709
    %v1718 = vadd.f32 %v1702, %v1710
    %v1719 = vadd.f32 %v1703, %v1711
    %v1720 = vadd.f32 %v1704, %v1712
    %v1721 = vadd.f32 %v1713, %v1657
    %v1722 = vadd.f32 %v1714, %v1658
    %v1723 = vadd.f32 %v1715, %v1659
    %v1724 = vadd.f32 %v1716, %v1660
    %v1725 = vadd.f32 %v1717, %v1661
    %v1726 = vadd.f32 %v1718, %v1662
    %v1727 = vadd.f32 %v1719, %v1663
    %v1728 = vadd.f32 %v1720, %v1664
    %1729 = vset.pattern.permute.xlu0 2
    %1730 = vperm.xlu0 %1729, %v63
    %v1731 = vpop.permute.xlu0 %1730
    %1733 = vset.pattern.permute.xlu0 2
    %1734 = vperm.xlu0 %1733, %v64
    %v1735 = vpop.permute.xlu0 %1734
    %v1738 = vsel %vm1094, %v61, 0
    %v1741 = vsel %vm1094, %v62, 0
    %1743 = vmatprep.subr.mxu0 %v1722
    %1744 = vmatpush1.msra.mxu0 %v1721
    %1745 = vmatprep.subr.mxu0 %v1726
    %1746 = vmatpush1.msra.mxu0 %v1725
    %1747 = vmatprep.subr.mxu0 0.0
    %1748 = vmatpush1.msra.mxu0 0.0
    %1749 = vmatprep.subr.mxu0 0.0
    %1750 = vmatpush1.msra.mxu0 0.0
    %1751 = vmatprep.subr.mxu0 0.0
    %1752 = vmatpush1.msra.mxu0 0.0
    %1753 = vmatprep.subr.mxu0 0.0
    %1754 = vmatpush1.msra.mxu0 0.0
    %1755 = vmatprep.subr.mxu0 0.0
    %1756 = vmatpush1.msra.mxu0 0.0
    %1757 = vmatprep.subr.mxu0 0.0
    %1758 = vmatpush1.msra.mxu0 0.0
    %1759 = vmatprep.subr.mxu0 0.0
    %1760 = vmatpush1.msra.mxu0 0.0
    %1761 = vmatprep.subr.mxu0 0.0
    %1762 = vmatpush1.msra.mxu0 0.0
    %1763 = vmatprep.subr.mxu0 0.0
    %1764 = vmatpush1.msra.mxu0 0.0
    %1765 = vmatprep.subr.mxu0 0.0
    %1766 = vmatpush1.msra.mxu0 0.0
    %1767 = vmatprep.subr.mxu0 0.0
    %1768 = vmatpush1.msra.mxu0 0.0
    %1769 = vmatprep.subr.mxu0 0.0
    %1770 = vmatpush1.msra.mxu0 0.0
    %1771 = vmatprep.subr.mxu0 0.0
    %1772 = vmatpush1.msra.mxu0 0.0
    %1773 = vmatprep.subr.mxu0 0.0
    %1774 = vmatpush1.msra.mxu0 0.0
    %1775 = vmatprep.subr.mxu0 0.0
    %1776 = vmatpush1.msra.mxu0 0.0
    %1777 = vmatprep.subr.mxu0 0.0
    %1778 = vmatpush1.msra.mxu0 0.0
    %1779 = vmatprep.subr.mxu0 0.0
    %1780 = vmatpush1.msra.mxu0 0.0
    %1781 = vmatprep.subr.mxu0 0.0
    %1782 = vmatpush1.msra.mxu0 0.0
    %1783 = vmatprep.subr.mxu0 0.0
    %1784 = vmatpush1.msra.mxu0 0.0
    %1785 = vmatprep.subr.mxu0 0.0
    %1786 = vmatpush1.msra.mxu0 0.0
    %1787 = vmatprep.subr.mxu0 0.0
    %1788 = vmatpush1.msra.mxu0 0.0
    %1789 = vmatprep.subr.mxu0 0.0
    %1790 = vmatpush1.msra.mxu0 0.0
    %1791 = vmatprep.subr.mxu0 0.0
    %1792 = vmatpush1.msra.mxu0 0.0
    %1793 = vmatprep.subr.mxu0 0.0
    %1794 = vmatpush1.msra.mxu0 0.0
    %1795 = vmatprep.subr.mxu0 0.0
    %1796 = vmatpush1.msra.mxu0 0.0
    %1797 = vmatprep.subr.mxu0 0.0
    %1798 = vmatpush1.msra.mxu0 0.0
    %1799 = vmatprep.subr.mxu0 0.0
    %1800 = vmatpush1.msra.mxu0 0.0
    %1801 = vmatprep.subr.mxu0 0.0
    %1802 = vmatpush1.msra.mxu0 0.0
    %1803 = vmatprep.subr.mxu0 0.0
    %1804 = vmatpush1.msra.mxu0 0.0
    %1805 = vmatprep.subr.mxu0 0.0
    %1806 = vmatpush1.msra.mxu0 0.0
    %1807 = vmatprep.mubr.f32.mxu0 0.0
    %1808 = vmatmul.mubr.f32.gmra.mrb[0].mxu0 %v1738
    %v1809 = vpop.f32.mrb[0].mxu0
    %v1810 = vadd.f32 %v1731, %v1809
    %v1811 = vpop.f32.mrb[0].mxu0
    %v1812 = vadd.f32 %v1731, %v1811
    %1813 = vmatprep.mubr.f32.mxu0 0.0
    %1814 = vmatmul.mubr.f32.gmra.mrb[0].mxu0 %v1741
    %v1815 = vpop.f32.mrb[0].mxu0
    %v1816 = vadd.f32 %v1735, %v1815
    %v1817 = vpop.f32.mrb[0].mxu0
    %v1818 = vadd.f32 %v1735, %v1817
    %1819 = vdwg.mxu0
    %1820 = vmatprep.subr.mxu0 %v1724
    %1821 = vmatpush1.msra.mxu0 %v1723
    %1822 = vmatprep.subr.mxu0 %v1728
    %1823 = vmatpush1.msra.mxu0 %v1727
    %1824 = vmatprep.subr.mxu0 0.0
    %1825 = vmatpush1.msra.mxu0 0.0
    %1826 = vmatprep.subr.mxu0 0.0
    %1827 = vmatpush1.msra.mxu0 0.0
    %1828 = vmatprep.subr.mxu0 0.0
    %1829 = vmatpush1.msra.mxu0 0.0
    %1830 = vmatprep.subr.mxu0 0.0
    %1831 = vmatpush1.msra.mxu0 0.0
    %1832 = vmatprep.subr.mxu0 0.0
    %1833 = vmatpush1.msra.mxu0 0.0
    %1834 = vmatprep.subr.mxu0 0.0
    %1835 = vmatpush1.msra.mxu0 0.0
    %1836 = vmatprep.subr.mxu0 0.0
    %1837 = vmatpush1.msra.mxu0 0.0
    %1838 = vmatprep.subr.mxu0 0.0
    %1839 = vmatpush1.msra.mxu0 0.0
    %1840 = vmatprep.subr.mxu0 0.0
    %1841 = vmatpush1.msra.mxu0 0.0
    %1842 = vmatprep.subr.mxu0 0.0
    %1843 = vmatpush1.msra.mxu0 0.0
    %1844 = vmatprep.subr.mxu0 0.0
    %1845 = vmatpush1.msra.mxu0 0.0
    %1846 = vmatprep.subr.mxu0 0.0
    %1847 = vmatpush1.msra.mxu0 0.0
    %1848 = vmatprep.subr.mxu0 0.0
    %1849 = vmatpush1.msra.mxu0 0.0
    %1850 = vmatprep.subr.mxu0 0.0
    %1851 = vmatpush1.msra.mxu0 0.0
    %1852 = vmatprep.subr.mxu0 0.0
    %1853 = vmatpush1.msra.mxu0 0.0
    %1854 = vmatprep.subr.mxu0 0.0
    %1855 = vmatpush1.msra.mxu0 0.0
    %1856 = vmatprep.subr.mxu0 0.0
    %1857 = vmatpush1.msra.mxu0 0.0
    %1858 = vmatprep.subr.mxu0 0.0
    %1859 = vmatpush1.msra.mxu0 0.0
    %1860 = vmatprep.subr.mxu0 0.0
    %1861 = vmatpush1.msra.mxu0 0.0
    %1862 = vmatprep.subr.mxu0 0.0
    %1863 = vmatpush1.msra.mxu0 0.0
    %1864 = vmatprep.subr.mxu0 0.0
    %1865 = vmatpush1.msra.mxu0 0.0
    %1866 = vmatprep.subr.mxu0 0.0
    %1867 = vmatpush1.msra.mxu0 0.0
    %1868 = vmatprep.subr.mxu0 0.0
    %1869 = vmatpush1.msra.mxu0 0.0
    %1870 = vmatprep.subr.mxu0 0.0
    %1871 = vmatpush1.msra.mxu0 0.0
    %1872 = vmatprep.subr.mxu0 0.0
    %1873 = vmatpush1.msra.mxu0 0.0
    %1874 = vmatprep.subr.mxu0 0.0
    %1875 = vmatpush1.msra.mxu0 0.0
    %1876 = vmatprep.subr.mxu0 0.0
    %1877 = vmatpush1.msra.mxu0 0.0
    %1878 = vmatprep.subr.mxu0 0.0
    %1879 = vmatpush1.msra.mxu0 0.0
    %1880 = vmatprep.subr.mxu0 0.0
    %1881 = vmatpush1.msra.mxu0 0.0
    %1882 = vmatprep.subr.mxu0 0.0
    %1883 = vmatpush1.msra.mxu0 0.0
    %1884 = vmatprep.mubr.f32.mxu0 0.0
    %1885 = vmatmul.mubr.f32.gmra.mrb[0].mxu0 %v1738
    %v1886 = vpop.f32.mrb[0].mxu0
    %v1887 = vadd.f32 %v1731, %v1886
    %v1888 = vpop.f32.mrb[0].mxu0
    %v1889 = vadd.f32 %v1731, %v1888
    %1890 = vmatprep.mubr.f32.mxu0 0.0
    %1891 = vmatmul.mubr.f32.gmra.mrb[0].mxu0 %v1741
    %v1892 = vpop.f32.mrb[0].mxu0
    %v1893 = vadd.f32 %v1735, %v1892
    %v1894 = vpop.f32.mrb[0].mxu0
    %v1895 = vadd.f32 %v1735, %v1894
    %1896 = vdwg.mxu0
    %1897 = vset.pattern.permute.xlu0 3
    %1898 = vperm.xlu0 %1897, %v63
    %v1899 = vpop.permute.xlu0 %1898
    %1901 = vset.pattern.permute.xlu0 3
    %1902 = vperm.xlu0 %1901, %v64
    %v1903 = vpop.permute.xlu0 %1902
    %v1906 = vsel %vm451, %v57, 0
    %v1909 = vsel %vm451, %v58, 0
    %1911 = vmatprep.subr.mxu0 %v40
    %1912 = vmatpush1.msra.mxu0 %v39
    %1913 = vmatprep.subr.mxu0 0.0
    %1914 = vmatpush1.msra.mxu0 0.0
    %1915 = vmatprep.subr.mxu0 0.0
    %1916 = vmatpush1.msra.mxu0 0.0
    %1917 = vmatprep.subr.mxu0 0.0
    %1918 = vmatpush1.msra.mxu0 0.0
    %1919 = vmatprep.subr.mxu0 0.0
    %1920 = vmatpush1.msra.mxu0 0.0
    %1921 = vmatprep.subr.mxu0 0.0
    %1922 = vmatpush1.msra.mxu0 0.0
    %1923 = vmatprep.subr.mxu0 0.0
    %1924 = vmatpush1.msra.mxu0 0.0
    %1925 = vmatprep.subr.mxu0 0.0
    %1926 = vmatpush1.msra.mxu0 0.0
    %1927 = vmatprep.subr.mxu0 0.0
    %1928 = vmatpush1.msra.mxu0 0.0
    %1929 = vmatprep.subr.mxu0 0.0
    %1930 = vmatpush1.msra.mxu0 0.0
    %1931 = vmatprep.subr.mxu0 0.0
    %1932 = vmatpush1.msra.mxu0 0.0
    %1933 = vmatprep.subr.mxu0 0.0
    %1934 = vmatpush1.msra.mxu0 0.0
    %1935 = vmatprep.subr.mxu0 0.0
    %1936 = vmatpush1.msra.mxu0 0.0
    %1937 = vmatprep.subr.mxu0 0.0
    %1938 = vmatpush1.msra.mxu0 0.0
    %1939 = vmatprep.subr.mxu0 0.0
    %1940 = vmatpush1.msra.mxu0 0.0
    %1941 = vmatprep.subr.mxu0 0.0
    %1942 = vmatpush1.msra.mxu0 0.0
    %1943 = vmatprep.subr.mxu0 0.0
    %1944 = vmatpush1.msra.mxu0 0.0
    %1945 = vmatprep.subr.mxu0 0.0
    %1946 = vmatpush1.msra.mxu0 0.0
    %1947 = vmatprep.subr.mxu0 0.0
    %1948 = vmatpush1.msra.mxu0 0.0
    %1949 = vmatprep.subr.mxu0 0.0
    %1950 = vmatpush1.msra.mxu0 0.0
    %1951 = vmatprep.subr.mxu0 0.0
    %1952 = vmatpush1.msra.mxu0 0.0
    %1953 = vmatprep.subr.mxu0 0.0
    %1954 = vmatpush1.msra.mxu0 0.0
    %1955 = vmatprep.subr.mxu0 0.0
    %1956 = vmatpush1.msra.mxu0 0.0
    %1957 = vmatprep.subr.mxu0 0.0
    %1958 = vmatpush1.msra.mxu0 0.0
    %1959 = vmatprep.subr.mxu0 0.0
    %1960 = vmatpush1.msra.mxu0 0.0
    %1961 = vmatprep.subr.mxu0 0.0
    %1962 = vmatpush1.msra.mxu0 0.0
    %1963 = vmatprep.subr.mxu0 0.0
    %1964 = vmatpush1.msra.mxu0 0.0
    %1965 = vmatprep.subr.mxu0 0.0
    %1966 = vmatpush1.msra.mxu0 0.0
    %1967 = vmatprep.subr.mxu0 0.0
    %1968 = vmatpush1.msra.mxu0 0.0
    %1969 = vmatprep.subr.mxu0 0.0
    %1970 = vmatpush1.msra.mxu0 0.0
    %1971 = vmatprep.subr.mxu0 0.0
    %1972 = vmatpush1.msra.mxu0 0.0
    %1973 = vmatprep.subr.mxu0 0.0
    %1974 = vmatpush1.msra.mxu0 0.0
    %1975 = vmatprep.mubr.f32.mxu0 0.0
    %1976 = vmatmul.mubr.f32.gmra.mrb[0].mxu0 %v1906
    %v1977 = vpop.f32.mrb[0].mxu0
    %v1978 = vadd.f32 %v1899, %v1977
    %v1979 = vpop.f32.mrb[0].mxu0
    %v1980 = vadd.f32 %v1899, %v1979
    %1981 = vmatprep.mubr.f32.mxu0 0.0
    %1982 = vmatmul.mubr.f32.gmra.mrb[0].mxu0 %v1909
    %v1983 = vpop.f32.mrb[0].mxu0
    %v1984 = vadd.f32 %v1903, %v1983
    %v1985 = vpop.f32.mrb[0].mxu0
    %v1986 = vadd.f32 %v1903, %v1985
    %1987 = vdwg.mxu0
    %1988 = vmatprep.subr.mxu0 %v42
    %1989 = vmatpush1.msra.mxu0 %v41
    %1990 = vmatprep.subr.mxu0 0.0
    %1991 = vmatpush1.msra.mxu0 0.0
    %1992 = vmatprep.subr.mxu0 0.0
    %1993 = vmatpush1.msra.mxu0 0.0
    %1994 = vmatprep.subr.mxu0 0.0
    %1995 = vmatpush1.msra.mxu0 0.0
    %1996 = vmatprep.subr.mxu0 0.0
    %1997 = vmatpush1.msra.mxu0 0.0
    %1998 = vmatprep.subr.mxu0 0.0
    %1999 = vmatpush1.msra.mxu0 0.0
    %2000 = vmatprep.subr.mxu0 0.0
    %2001 = vmatpush1.msra.mxu0 0.0
    %2002 = vmatprep.subr.mxu0 0.0
    %2003 = vmatpush1.msra.mxu0 0.0
    %2004 = vmatprep.subr.mxu0 0.0
    %2005 = vmatpush1.msra.mxu0 0.0
    %2006 = vmatprep.subr.mxu0 0.0
    %2007 = vmatpush1.msra.mxu0 0.0
    %2008 = vmatprep.subr.mxu0 0.0
    %2009 = vmatpush1.msra.mxu0 0.0
    %2010 = vmatprep.subr.mxu0 0.0
    %2011 = vmatpush1.msra.mxu0 0.0
    %2012 = vmatprep.subr.mxu0 0.0
    %2013 = vmatpush1.msra.mxu0 0.0
    %2014 = vmatprep.subr.mxu0 0.0
    %2015 = vmatpush1.msra.mxu0 0.0
    %2016 = vmatprep.subr.mxu0 0.0
    %2017 = vmatpush1.msra.mxu0 0.0
    %2018 = vmatprep.subr.mxu0 0.0
    %2019 = vmatpush1.msra.mxu0 0.0
    %2020 = vmatprep.subr.mxu0 0.0
    %2021 = vmatpush1.msra.mxu0 0.0
    %2022 = vmatprep.subr.mxu0 0.0
    %2023 = vmatpush1.msra.mxu0 0.0
    %2024 = vmatprep.subr.mxu0 0.0
    %2025 = vmatpush1.msra.mxu0 0.0
    %2026 = vmatprep.subr.mxu0 0.0
    %2027 = vmatpush1.msra.mxu0 0.0
    %2028 = vmatprep.subr.mxu0 0.0
    %2029 = vmatpush1.msra.mxu0 0.0
    %2030 = vmatprep.subr.mxu0 0.0
    %2031 = vmatpush1.msra.mxu0 0.0
    %2032 = vmatprep.subr.mxu0 0.0
    %2033 = vmatpush1.msra.mxu0 0.0
    %2034 = vmatprep.subr.mxu0 0.0
    %2035 = vmatpush1.msra.mxu0 0.0
    %2036 = vmatprep.subr.mxu0 0.0
    %2037 = vmatpush1.msra.mxu0 0.0
    %2038 = vmatprep.subr.mxu0 0.0
    %2039 = vmatpush1.msra.mxu0 0.0
    %2040 = vmatprep.subr.mxu0 0.0
    %2041 = vmatpush1.msra.mxu0 0.0
    %2042 = vmatprep.subr.mxu0 0.0
    %2043 = vmatpush1.msra.mxu0 0.0
    %2044 = vmatprep.subr.mxu0 0.0
    %2045 = vmatpush1.msra.mxu0 0.0
    %2046 = vmatprep.subr.mxu0 0.0
    %2047 = vmatpush1.msra.mxu0 0.0
    %2048 = vmatprep.subr.mxu0 0.0
    %2049 = vmatpush1.msra.mxu0 0.0
    %2050 = vmatprep.subr.mxu0 0.0
    %2051 = vmatpush1.msra.mxu0 0.0
    %2052 = vmatprep.mubr.f32.mxu0 0.0
    %2053 = vmatmul.mubr.f32.gmra.mrb[0].mxu0 %v1906
    %v2054 = vpop.f32.mrb[0].mxu0
    %v2055 = vadd.f32 %v1899, %v2054
    %v2056 = vpop.f32.mrb[0].mxu0
    %v2057 = vadd.f32 %v1899, %v2056
    %2058 = vmatprep.mubr.f32.mxu0 0.0
    %2059 = vmatmul.mubr.f32.gmra.mrb[0].mxu0 %v1909
    %v2060 = vpop.f32.mrb[0].mxu0
    %v2061 = vadd.f32 %v1903, %v2060
    %v2062 = vpop.f32.mrb[0].mxu0
    %v2063 = vadd.f32 %v1903, %v2062
    %2064 = vdwg.mxu0
    %v2065 = vadd.f32 %v1810, %v1978
    %v2066 = vadd.f32 %v1812, %v1980
    %v2067 = vadd.f32 %v1887, %v2055
    %v2068 = vadd.f32 %v1889, %v2057
    %v2069 = vadd.f32 %v1816, %v1984
    %v2070 = vadd.f32 %v1818, %v1986
    %v2071 = vadd.f32 %v1893, %v2061
    %v2072 = vadd.f32 %v1895, %v2063
    %2073 = vst [vmem:[#allocation5] sm:$0xff] %v2065
    %2074 = vst [vmem:[#allocation5 + $0x8] sm:$0xff] %v2066
    %2075 = vst [vmem:[#allocation5 + $0x10] sm:$0xff] %v2067
    %2076 = vst [vmem:[#allocation5 + $0x18] sm:$0xff] %v2068
    %2077 = vst [vmem:[#allocation5 + $0x20] sm:$0xff] %v2069
    %2078 = vst [vmem:[#allocation5 + $0x28] sm:$0xff] %v2070
    %2079 = vst [vmem:[#allocation5 + $0x30] sm:$0xff] %v2071
    %2080 = vst [vmem:[#allocation5 + $0x38] sm:$0xff] %v2072
    // Predicated region
    $region34: #{tpu_custom_call.1} parent=1 // pred_check
      _
    $region35: #{tpu_custom_call.1} parent=1 // pred_check_branch
      %2082 = sbr.rel (0) target = $region37
    $region36: #{tpu_custom_call.1} parent=1 // pred_region
      %s2084 = ssub.s32 1024, 1024
      %2085 = vsyncadd [#allocation4], %s2084
      %s2086 = sshll.u32 [#allocation5], 4
      %s2087 = int_to_ptr.vmem [resolvable:$true] %s2086
      %2092 = dma.vmem_to_hbm [thread:$0]  %s2087, 1024, %s7, [#allocation4], 512, 512, 32
    $region37: #{tpu_custom_call.1} parent=1 // pred_fallthru
      _
    // Predicated region
    $region38: #{tpu_custom_call.1} parent=1 // pred_check
      _
    $region39: #{tpu_custom_call.1} parent=1 // pred_check_branch
      %2094 = sbr.rel (0) target = $region41
    $region40: #{tpu_custom_call.1} parent=1 // pred_region
      %2095 = dma.done [#allocation4], 1024
    $region41: #{tpu_custom_call.1} parent=1 // pred_fallthru
      _
    %2096 = vsyncpa [#allocation3], 1
    %2097 = vsyncpa [#allocation4], 1

</llo_original>
